<compile_context>
chip_gen: v7x
topology: tpu7x:2x2x1
jax: 0.10.0
libtpu: 0.0.40
codegen_flags: <defaults>
</compile_context>

<pallas_src>
import functools

import jax
import jax.numpy as jnp
from jax.experimental import pallas as pl
from jax.experimental.pallas import tpu as pltpu


def _round_up(n, m):
    return ((n + m - 1) // m) * m


def _pick_tb(batch, tb):
    """Large, sublane-aligned batch tile, capped so the parallel batch grid
    keeps >= 2 steps when the batch allows it (v7x: 2 TensorCores)."""
    b8 = _round_up(batch, 8)
    half = _round_up(-(-b8 // 2), 8)          # ceil(b8/2), rounded to 8
    t = min(tb, b8, max(8, half))
    return max(8, (t // 8) * 8)


def prepare_router_params(params):
    """One-time (param-load-time) weight preparation.

    Pads the selector hidden dim and the class dim up to multiples of 128
    (lane-tile alignment / lane-dense stores), fuses the two K=D weights into
    a single [D, HSELp+Cp] bf16 matrix, and casts the selector layer-2 weight
    to bf16. Keeping this out of the per-call path removes an extra HBM round
    trip that would otherwise dominate this small kernel's runtime.
    """
    w1, b1, w2, b2, wm, bm = params
    D, hsel = w1.shape
    C = wm.shape[1]
    hselp = _round_up(hsel, 128)
    cp = _round_up(C, 128)
    if hselp != hsel:
        w1 = jnp.pad(w1, ((0, 0), (0, hselp - hsel)))
        b1 = jnp.pad(b1, ((0, 0), (0, hselp - hsel)))
        w2 = jnp.pad(w2, ((0, hselp - hsel), (0, 0)))   # padded h cols -> 0
    if cp != C:
        wm = jnp.pad(wm, ((0, 0), (0, cp - C)))
        bm = jnp.pad(bm, ((0, 0), (0, cp - C)))
    wcat = jnp.concatenate([w1, wm], axis=1).astype(jnp.bfloat16)  # [D, hselp+cp]
    return {
        "wcat": wcat,
        "b1": b1.astype(jnp.float32),
        "w2": w2.astype(jnp.bfloat16),
        "b2": b2.astype(jnp.float32),
        "bm": bm.astype(jnp.float32),
        "D": D, "HSELP": hselp, "C": C, "CP": cp,
    }


def router_kernel(x_ref, wcat_ref, b1_ref, w2_ref, b2_ref, bm_ref, g_ref,
                  out_ref, idx_ref, *, hsel):
    """One batch tile of the Router forward, fully in VMEM.

    x_ref    : [TB, D]         f32 input features (cast to bf16 in-kernel)
    wcat_ref : [D, hsel+Cp]    bf16 fused weights = concat([w1 | wm], axis=1)
    b1_ref   : [1, hsel]       f32 selector layer-1 bias
    w2_ref   : [hsel, 3]       bf16 selector layer-2 weight
    b2_ref   : [1, 3]          f32 selector layer-2 bias
    bm_ref   : [1, Cp]         f32 shared BaseModel bias (zero-padded)
    g_ref    : [TB, 3]         f32 pre-sampled Gumbel(0,1) noise
    out_ref  : [TB, Cp]        routed output (lane-dense, Cp % 128 == 0)
    idx_ref  : [TB, 1]         int32 selected route index (hard Gumbel argmax)
    """
    x = x_ref[...].astype(jnp.bfloat16)                        # VPU cast, free

    # ---- single fused K=D MXU GEMM: selector layer-1 + shared model --------
    fused = jnp.dot(x, wcat_ref[...],
                    preferred_element_type=jnp.float32)        # [TB, hsel+Cp]

    # shared BaseModel: Dropout (identity at inference) -> Linear.
    # With shared_model=True the one-hot routing weight is provably 1.0, so
    # the routed sum equals model_out; write it directly (no dead multiply).
    out_ref[...] = (fused[:, hsel:] + bm_ref[...]).astype(out_ref.dtype)

    # ---- selector: Linear(D,128) -> ReLU -> Linear(128,3) ------------------
    h = jnp.maximum(fused[:, :hsel] + b1_ref[...], 0.0)        # [TB, hsel] f32
    logits = jnp.dot(h.astype(jnp.bfloat16), w2_ref[...],
                     preferred_element_type=jnp.float32) + b2_ref[...]  # [TB,3]

    # hard Gumbel-Softmax forward == one_hot(argmax((logits + g)/tau));
    # tau > 0 never changes the argmax, so the scale is dropped.
    y = logits + g_ref[...]                                    # [TB, 3]
    m = jnp.max(y, axis=-1, keepdims=True)                     # [TB, 1]
    col = jax.lax.broadcasted_iota(jnp.int32, y.shape, 1)      # [TB, 3]
    first_idx = jnp.min(jnp.where(y == m, col, y.shape[-1]),
                        axis=-1, keepdims=True)                # first max idx
    idx_ref[...] = first_idx.astype(jnp.int32)


def router_forward(x, prepped, gumbel_noise, tau=1.0, tb=512,
                   out_dtype=jnp.float32):
    """Router forward.  `tau` is accepted for API fidelity; the hard
    Gumbel-Softmax forward value is independent of any tau > 0.

    Returns (selected_output [B, C], route_idx [B])."""
    del tau
    B, D = x.shape
    assert D == prepped["D"]
    hselp, C, cp = prepped["HSELP"], prepped["C"], prepped["CP"]

    TB = _pick_tb(B, tb)
    grid = (pl.cdiv(B, TB),)   # ragged last block; OOB stores are masked

    out, idx = pl.pallas_call(
        functools.partial(router_kernel, hsel=hselp),
        out_shape=(jax.ShapeDtypeStruct((B, cp), out_dtype),
                   jax.ShapeDtypeStruct((B, 1), jnp.int32)),
        grid=grid,
        in_specs=[
            pl.BlockSpec((TB, D), lambda i: (i, 0)),             # x (batch tile)
            pl.BlockSpec((D, hselp + cp), lambda i: (0, 0)),     # fused weights
            pl.BlockSpec((1, hselp), lambda i: (0, 0)),          # b1
            pl.BlockSpec((hselp, 3), lambda i: (0, 0)),          # w2
            pl.BlockSpec((1, 3), lambda i: (0, 0)),              # b2
            pl.BlockSpec((1, cp), lambda i: (0, 0)),             # bm
            pl.BlockSpec((TB, 3), lambda i: (i, 0)),             # gumbel noise
        ],
        out_specs=(pl.BlockSpec((TB, cp), lambda i: (i, 0)),     # routed output
                   pl.BlockSpec((TB, 1), lambda i: (i, 0))),     # route index
        compiler_params=pltpu.CompilerParams(
            dimension_semantics=("parallel",)),                  # megacore/v7x
    )(x, prepped["wcat"], prepped["b1"], prepped["w2"], prepped["b2"],
      prepped["bm"], gumbel_noise)

    return out[:, :C], idx[:, 0]


def router_reference(x, params, gumbel_noise, tau=1.0):
    """Plain-JAX reference mirroring the kernel's bf16-input / f32-accumulate
    numerics (bf16 x bf16 products are exact in f32)."""
    w1, b1, w2, b2, wm, bm = params
    f32 = jnp.float32
    xb = x.astype(jnp.bfloat16).astype(f32)
    w1b = w1.astype(jnp.bfloat16).astype(f32)
    w2b = w2.astype(jnp.bfloat16).astype(f32)
    wmb = wm.astype(jnp.bfloat16).astype(f32)

    h = jnp.maximum(xb @ w1b + b1, 0.0)
    logits = h.astype(jnp.bfloat16).astype(f32) @ w2b + b2
    y = (logits + gumbel_noise) / tau
    idx = jnp.argmax(y, axis=-1)
    sel = jax.nn.one_hot(idx, 3, dtype=f32)
    model_out = xb @ wmb + bm
    outputs = jnp.stack([model_out, model_out, model_out], axis=1)
    return jnp.sum(outputs * sel[..., None], axis=1), idx


if __name__ == "__main__":
    # Small shapes consistent with Router(num_classes, backbone_output_size).
    # B and NC deliberately NOT multiples of the tile sizes to exercise the
    # ragged batch grid and the class-dim lane padding.
    B, D, HSEL, NC = 200, 256, 128, 120
    TAU = 1.0

    key = jax.random.PRNGKey(0)
    kx, k1, k2, k3, k4, k5, k6, kg = jax.random.split(key, 8)

    x = jax.random.normal(kx, (B, D), dtype=jnp.float32)

    s1 = 1.0 / jnp.sqrt(jnp.float32(D))
    s2 = 1.0 / jnp.sqrt(jnp.float32(HSEL))
    w1 = jax.random.uniform(k1, (D, HSEL), jnp.float32, -s1, s1)
    b1 = jax.random.uniform(k2, (1, HSEL), jnp.float32, -s1, s1)
    w2 = jax.random.uniform(k3, (HSEL, 3), jnp.float32, -s2, s2)
    b2 = jax.random.uniform(k4, (1, 3), jnp.float32, -s2, s2)
    wm = jax.random.uniform(k5, (D, NC), jnp.float32, -s1, s1)
    bm = jax.random.uniform(k6, (1, NC), jnp.float32, -s1, s1)
    params = (w1, b1, w2, b2, wm, bm)

    # Gumbel(0,1) noise, sampled once (deterministic) and fed to the kernel.
    u = jax.random.uniform(kg, (B, 3), jnp.float32, 1e-6, 1.0 - 1e-6)
    gumbel_noise = -jnp.log(-jnp.log(u))

    # One-time weight prep (would live at model init / param load in practice).
    prepped = jax.tree_util.tree_map(jax.block_until_ready,
                                     prepare_router_params(params))

    out, idx = router_forward(x, prepped, gumbel_noise, tau=TAU)
    out = jax.block_until_ready(out)
    idx = jax.block_until_ready(idx)

    ref_out, ref_idx = router_reference(x, params, gumbel_noise, tau=TAU)
    assert out.shape == (B, NC)
    assert idx.shape == (B,)
    assert jnp.array_equal(idx, ref_idx), "route index mismatch vs reference"
    assert jnp.allclose(out, ref_out, atol=1e-3, rtol=1e-3), \
        "output mismatch vs reference"

    print("KERNEL_OK")
</pallas_src>

<mosaic_0001>
module attributes {stable_mosaic.version = 11 : i64} {
  func.func @router_kernel(%arg0: i32, %arg1: memref<104x256xf32, #tpu.memory_space<vmem>>, %arg2: memref<256x256xbf16, #tpu.memory_space<vmem>>, %arg3: memref<1x128xf32, #tpu.memory_space<vmem>>, %arg4: memref<128x3xbf16, #tpu.memory_space<vmem>>, %arg5: memref<1x3xf32, #tpu.memory_space<vmem>>, %arg6: memref<1x128xf32, #tpu.memory_space<vmem>>, %arg7: memref<104x3xf32, #tpu.memory_space<vmem>>, %arg8: memref<104x128xf32, #tpu.memory_space<vmem>>, %arg9: memref<104x1xi32, #tpu.memory_space<vmem>>) attributes {dimension_semantics = [#tpu.dimension_semantics<parallel>], iteration_bounds = array<i64: 2>, scalar_prefetch = 0 : i64, scratch_operands = 0 : i64, tpu.core_type = #tpu.core_type<tc>, window_params = [{transform_indices = @transform_0, window_bounds = array<i64: 104, 256>}, {pipeline_mode = #tpu.pipeline_mode<synchronous>, transform_indices = @transform_1, window_bounds = array<i64: 256, 256>}, {pipeline_mode = #tpu.pipeline_mode<synchronous>, transform_indices = @transform_2, window_bounds = array<i64: 1, 128>}, {pipeline_mode = #tpu.pipeline_mode<synchronous>, transform_indices = @transform_3, window_bounds = array<i64: 128, 3>}, {pipeline_mode = #tpu.pipeline_mode<synchronous>, transform_indices = @transform_4, window_bounds = array<i64: 1, 3>}, {pipeline_mode = #tpu.pipeline_mode<synchronous>, transform_indices = @transform_5, window_bounds = array<i64: 1, 128>}, {transform_indices = @transform_6, window_bounds = array<i64: 104, 3>}, {transform_indices = @transform_7, window_bounds = array<i64: 104, 128>}, {transform_indices = @transform_8, window_bounds = array<i64: 104, 1>}]} {
    %c0 = arith.constant 0 : index
    %c0_0 = arith.constant 0 : index
    %0 = vector.load %arg1[%c0, %c0_0] : memref<104x256xf32, #tpu.memory_space<vmem>>, vector<104x256xf32>
    %1 = arith.truncf %0 : vector<104x256xf32> to vector<104x256xbf16>
    %c0_1 = arith.constant 0 : index
    %c0_2 = arith.constant 0 : index
    %2 = vector.load %arg2[%c0_1, %c0_2] : memref<256x256xbf16, #tpu.memory_space<vmem>>, vector<256x256xbf16>
    %cst = arith.constant dense<0.000000e+00> : vector<104x256xf32>
    %3 = tpu.matmul %1, %2, %cst {dimension_numbers = #tpu.dot_dimension_numbers<[1], [0], [0], [1], [0, 0, 1, 1], [], []>} : vector<104x256xbf16>, vector<256x256xbf16>, vector<104x256xf32> -> vector<104x256xf32>
    %4 = vector.extract_strided_slice %3 {offsets = [0, 128], sizes = [104, 128], strides = [1, 1]} : vector<104x256xf32> to vector<104x128xf32>
    %c0_3 = arith.constant 0 : index
    %c0_4 = arith.constant 0 : index
    %5 = vector.load %arg6[%c0_3, %c0_4] : memref<1x128xf32, #tpu.memory_space<vmem>>, vector<1x128xf32>
    %6 = vector.broadcast %5 : vector<1x128xf32> to vector<104x128xf32>
    %7 = arith.addf %4, %6 : vector<104x128xf32>
    %c0_5 = arith.constant 0 : index
    %c0_6 = arith.constant 0 : index
    %8 = vector.load %arg8[%c0_5, %c0_6] : memref<104x128xf32, #tpu.memory_space<vmem>>, vector<104x128xf32>
    tpu.vector_store %arg8[%c0_5, %c0_6], %7 {strides = array<i32>} : memref<104x128xf32, #tpu.memory_space<vmem>>, vector<104x128xf32>,
    %9 = vector.extract_strided_slice %3 {offsets = [0, 0], sizes = [104, 128], strides = [1, 1]} : vector<104x256xf32> to vector<104x128xf32>
    %c0_7 = arith.constant 0 : index
    %c0_8 = arith.constant 0 : index
    %10 = vector.load %arg3[%c0_7, %c0_8] : memref<1x128xf32, #tpu.memory_space<vmem>>, vector<1x128xf32>
    %11 = vector.broadcast %10 : vector<1x128xf32> to vector<104x128xf32>
    %12 = arith.addf %9, %11 : vector<104x128xf32>
    %cst_9 = arith.constant 0.000000e+00 : f32
    %13 = vector.broadcast %cst_9 : f32 to vector<104x128xf32>
    %14 = arith.maximumf %12, %13 : vector<104x128xf32>
    %15 = arith.truncf %14 : vector<104x128xf32> to vector<104x128xbf16>
    %c0_10 = arith.constant 0 : index
    %c0_11 = arith.constant 0 : index
    %16 = vector.load %arg4[%c0_10, %c0_11] : memref<128x3xbf16, #tpu.memory_space<vmem>>, vector<128x3xbf16>
    %cst_12 = arith.constant dense<0.000000e+00> : vector<104x3xf32>
    %17 = tpu.matmul %15, %16, %cst_12 {dimension_numbers = #tpu.dot_dimension_numbers<[1], [0], [0], [1], [0, 0, 1, 1], [], []>} : vector<104x128xbf16>, vector<128x3xbf16>, vector<104x3xf32> -> vector<104x3xf32>
    %c0_13 = arith.constant 0 : index
    %c0_14 = arith.constant 0 : index
    %18 = vector.load %arg5[%c0_13, %c0_14] : memref<1x3xf32, #tpu.memory_space<vmem>>, vector<1x3xf32>
    %19 = vector.broadcast %18 : vector<1x3xf32> to vector<104x3xf32>
    %20 = arith.addf %17, %19 : vector<104x3xf32>
    %c0_15 = arith.constant 0 : index
    %c0_16 = arith.constant 0 : index
    %21 = vector.load %arg7[%c0_15, %c0_16] : memref<104x3xf32, #tpu.memory_space<vmem>>, vector<104x3xf32>
    %22 = arith.addf %20, %21 : vector<104x3xf32>
    %cst_17 = arith.constant dense<0xFF800000> : vector<104xf32>
    %23 = vector.multi_reduction <maximumf>, %22, %cst_17 [1] : vector<104x3xf32> to vector<104xf32>
    %24 = vector.shape_cast %23 : vector<104xf32> to vector<104x1xf32>
    %25 = tpu.iota {dimensions = array<i32: 1>} : vector<104x3xi32>
    %26 = vector.broadcast %24 : vector<104x1xf32> to vector<104x3xf32>
    %27 = arith.cmpf oeq, %22, %26 : vector<104x3xf32>
    %c3_i32 = arith.constant 3 : i32
    %28 = vector.broadcast %c3_i32 : i32 to vector<104x3xi32>
    %29 = arith.select %27, %25, %28 : vector<104x3xi1>, vector<104x3xi32>
    %cst_18 = arith.constant dense<2147483647> : vector<104xi32>
    %30 = vector.multi_reduction <minsi>, %29, %cst_18 [1] : vector<104x3xi32> to vector<104xi32>
    %31 = vector.shape_cast %30 : vector<104xi32> to vector<104x1xi32>
    %c0_19 = arith.constant 0 : index
    %c0_20 = arith.constant 0 : index
    %32 = vector.load %arg9[%c0_19, %c0_20] : memref<104x1xi32, #tpu.memory_space<vmem>>, vector<104x1xi32>
    tpu.vector_store %arg9[%c0_19, %c0_20], %31 {strides = array<i32>} : memref<104x1xi32, #tpu.memory_space<vmem>>, vector<104x1xi32>,
    return
  }
  func.func @transform_0(%arg0: i32) -> (i32, i32) {
    %c0_i32 = arith.constant 0 : i32
    %c0_i32_0 = arith.constant 0 : i32
    return %arg0, %c0_i32 : i32, i32
  }
  func.func @transform_1(%arg0: i32) -> (i32, i32) {
    %c0_i32 = arith.constant 0 : i32
    %c0_i32_0 = arith.constant 0 : i32
    %c0_i32_1 = arith.constant 0 : i32
    return %c0_i32, %c0_i32_0 : i32, i32
  }
  func.func @transform_2(%arg0: i32) -> (i32, i32) {
    %c0_i32 = arith.constant 0 : i32
    %c0_i32_0 = arith.constant 0 : i32
    %c0_i32_1 = arith.constant 0 : i32
    return %c0_i32, %c0_i32_0 : i32, i32
  }
  func.func @transform_3(%arg0: i32) -> (i32, i32) {
    %c0_i32 = arith.constant 0 : i32
    %c0_i32_0 = arith.constant 0 : i32
    %c0_i32_1 = arith.constant 0 : i32
    return %c0_i32, %c0_i32_0 : i32, i32
  }
  func.func @transform_4(%arg0: i32) -> (i32, i32) {
    %c0_i32 = arith.constant 0 : i32
    %c0_i32_0 = arith.constant 0 : i32
    %c0_i32_1 = arith.constant 0 : i32
    return %c0_i32, %c0_i32_0 : i32, i32
  }
  func.func @transform_5(%arg0: i32) -> (i32, i32) {
    %c0_i32 = arith.constant 0 : i32
    %c0_i32_0 = arith.constant 0 : i32
    %c0_i32_1 = arith.constant 0 : i32
    return %c0_i32, %c0_i32_0 : i32, i32
  }
  func.func @transform_6(%arg0: i32) -> (i32, i32) {
    %c0_i32 = arith.constant 0 : i32
    %c0_i32_0 = arith.constant 0 : i32
    return %arg0, %c0_i32 : i32, i32
  }
  func.func @transform_7(%arg0: i32) -> (i32, i32) {
    %c0_i32 = arith.constant 0 : i32
    %c0_i32_0 = arith.constant 0 : i32
    return %arg0, %c0_i32 : i32, i32
  }
  func.func @transform_8(%arg0: i32) -> (i32, i32) {
    %c0_i32 = arith.constant 0 : i32
    %c0_i32_0 = arith.constant 0 : i32
    return %arg0, %c0_i32 : i32, i32
  }
}

</mosaic_0001>

<llo_original>
// kernel: tpu_custom_call.1
$region0: #{tpu_custom_call.1}
  #allocation0 [shape = 'u32[]', space=smem, size = 0x4, offset = 0x4, fixed_abs, tag = 'smem constant byte address 0x4 - core index']
  #allocation1 [shape = 'u32[144,128]{1,0:T(1,128)}', space=vmem, size = 0x12000, scoped, tag = 'internal scratch']
  %s0 = inlined_call_operand.hbm [shape: f32[200,256], index: 0, kind: input, shape index: {}]
  %s1 = inlined_call_operand.vmem [shape: bf16[256,256], index: 1, kind: input, shape index: {}]
  %s2 = inlined_call_operand.vmem [shape: f32[1,128], index: 2, kind: input, shape index: {}]
  %s3 = inlined_call_operand.vmem [shape: bf16[128,3], index: 3, kind: input, shape index: {}]
  %s4 = inlined_call_operand.vmem [shape: f32[1,3], index: 4, kind: input, shape index: {}]
  %s5 = inlined_call_operand.vmem [shape: f32[1,128], index: 5, kind: input, shape index: {}]
  %s6 = inlined_call_operand.vmem [shape: f32[200,3], index: 6, kind: input, shape index: {}]
  %s7 = inlined_call_operand.hbm [shape: f32[200,128], index: 7, kind: output, shape index: {0}]
  %s8 = inlined_call_operand.vmem [shape: s32[200,1], index: 8, kind: output, shape index: {1}]
  %9 = xla_tuple %s7, %s8
  %s10 = sld [smem:[#allocation0]]
  $region121: #{tpu_custom_call.1} parent=0
    _
  %s12 = ssub.s32 1, %s10
  %s13 = scalar_select 0, %s12, %s10
  $region1: #{tpu_custom_call.1} parent=0
    #allocation2 [shape = 'u8[212992]{0}', space=vmem, size = 0x34000, scoped, tag = 'input window, operand 0']
    #allocation3 [shape = 's32[2]{0}', space=sflag, size = 0x8, scoped, tag = 'scoped memory for tpu_custom_call.1']
    #allocation4 [shape = 's32[2]{0}', space=sflag, size = 0x8, scoped, tag = 'scoped memory for tpu_custom_call.1']
    #allocation5 [shape = 'u8[106496]{0}', space=vmem, size = 0x1a000, scoped, tag = 'output window, operand 0']
    #allocation6 [shape = 'u8[106496]{0}', space=vmem, size = 0x1a000, scoped, tag = 'output window, operand 1']
    %14 = vsyncpa [#allocation3], 0
    %s15 = scalar_lea.sflag [#allocation3], 1
    %16 = vsyncpa %s15, 0
    %17 = vsyncpa [#allocation4], 0
    %s18 = scalar_lea.sflag [#allocation4], 1
    %19 = vsyncpa %s18, 0
    loop: start=0, step=1, limit=4
    $region2: #{tpu_custom_call.1} parent=1 // loop_pre_header
      _
    $region3: #{tpu_custom_call.1} parent=1 // loop_header
      %s21 = sphi 0, %s25
      %p22 = scmp.ge.s32.totalorder %s21, 4
      %s31 = sphi 0, %s33
      %s34 = sphi 0, %s31
      %s35 = sphi 0, %s34
      %s51 = sphi 0, %s35
      %s55 = sphi 0, %s55
      %s57 = sphi 0, %s55
      %s58 = sphi 0, %s57
      %s72 = sphi 0, %s58
      %s76 = sphi 0, %s76
      %s78 = sphi 0, %s76
      %s79 = sphi 0, %s78
      %s93 = sphi 0, %s79
      %s97 = sphi 0, %s97
      %s99 = sphi 0, %s97
      %s100 = sphi 0, %s99
      %s114 = sphi 0, %s100
      %s118 = sphi 0, %s118
      %s120 = sphi 0, %s118
      %s121 = sphi 0, %s120
      %s135 = sphi 0, %s121
      %s139 = sphi 0, %s139
      %s141 = sphi 0, %s139
      %s142 = sphi 0, %s141
      %s156 = sphi 0, %s142
      %s162 = sphi 0, %s164
      %s165 = sphi 0, %s162
      %s166 = sphi 0, %s165
      %s182 = sphi 0, %s166
      %s188 = sphi 0, %s190
      %s191 = sphi 0, %s188
      %s192 = sphi 0, %s191
      %s208 = sphi 0, %s192
      %s214 = sphi 0, %s216
      %s217 = sphi 0, %s214
      %s218 = sphi 0, %s217
      %s234 = sphi 0, %s218
    $region4: #{tpu_custom_call.1} parent=1 // loop_header_branch
      %24 = sbr.rel (%p22) target = $region8
    $region5: #{tpu_custom_call.1} parent=1 // loop_body
      %s26 = ssub.s32 %s21, 1
      %s27 = ssub.s32 %s21, 2
      %s28 = sadd.s32 %s21, 1
      %s29 = ssub.s32 %s21, %s28
      %p30 = scmp.eq.s32.totalorder %s29, 0
      %s32 = sadd.s32 %s31, 1
      %s33 = scalar_select %p30, %s31, %s32
      %p36 = pneg %p30
      %p37 = scmp.eq.s32.totalorder %s21, 1
      %p38 = por %p36, %p37
      %p39 = scmp.ne.s32.totalorder %s31, %s34
      %p40 = scmp.eq.s32.totalorder %s21, 0
      %p41 = por %p39, %p40
      %p42 = scmp.ne.s32.totalorder %s31, %s34
      %p43 = scmp.eq.s32.totalorder %s26, 1
      %p44 = por %p42, %p43
      %p45 = scmp.ne.s32.totalorder %s34, %s35
      %p46 = scmp.eq.s32.totalorder %s26, 0
      %p47 = por %p45, %p46
      %p48 = scmp.ne.s32.totalorder %s34, %s35
      %p49 = scmp.eq.s32.totalorder %s27, 1
      %p50 = por %p48, %p49
      %p52 = scmp.ne.s32.totalorder %s35, %s51
      %p53 = scmp.eq.s32.totalorder %s27, 0
      %p54 = por %p52, %p53
      %s56 = sadd.s32 %s55, 1
      %p59 = scmp.eq.s32.totalorder %s21, 1
      %p60 = scmp.ne.s32.totalorder %s55, %s57
      %p61 = scmp.eq.s32.totalorder %s21, 0
      %p62 = por %p60, %p61
      %p63 = scmp.ne.s32.totalorder %s55, %s57
      %p64 = scmp.eq.s32.totalorder %s26, 1
      %p65 = por %p63, %p64
      %p66 = scmp.ne.s32.totalorder %s57, %s58
      %p67 = scmp.eq.s32.totalorder %s26, 0
      %p68 = por %p66, %p67
      %p69 = scmp.ne.s32.totalorder %s57, %s58
      %p70 = scmp.eq.s32.totalorder %s27, 1
      %p71 = por %p69, %p70
      %p73 = scmp.ne.s32.totalorder %s58, %s72
      %p74 = scmp.eq.s32.totalorder %s27, 0
      %p75 = por %p73, %p74
      %s77 = sadd.s32 %s76, 1
      %p80 = scmp.eq.s32.totalorder %s21, 1
      %p81 = scmp.ne.s32.totalorder %s76, %s78
      %p82 = scmp.eq.s32.totalorder %s21, 0
      %p83 = por %p81, %p82
      %p84 = scmp.ne.s32.totalorder %s76, %s78
      %p85 = scmp.eq.s32.totalorder %s26, 1
      %p86 = por %p84, %p85
      %p87 = scmp.ne.s32.totalorder %s78, %s79
      %p88 = scmp.eq.s32.totalorder %s26, 0
      %p89 = por %p87, %p88
      %p90 = scmp.ne.s32.totalorder %s78, %s79
      %p91 = scmp.eq.s32.totalorder %s27, 1
      %p92 = por %p90, %p91
      %p94 = scmp.ne.s32.totalorder %s79, %s93
      %p95 = scmp.eq.s32.totalorder %s27, 0
      %p96 = por %p94, %p95
      %s98 = sadd.s32 %s97, 1
      %p101 = scmp.eq.s32.totalorder %s21, 1
      %p102 = scmp.ne.s32.totalorder %s97, %s99
      %p103 = scmp.eq.s32.totalorder %s21, 0
      %p104 = por %p102, %p103
      %p105 = scmp.ne.s32.totalorder %s97, %s99
      %p106 = scmp.eq.s32.totalorder %s26, 1
      %p107 = por %p105, %p106
      %p108 = scmp.ne.s32.totalorder %s99, %s100
      %p109 = scmp.eq.s32.totalorder %s26, 0
      %p110 = por %p108, %p109
      %p111 = scmp.ne.s32.totalorder %s99, %s100
      %p112 = scmp.eq.s32.totalorder %s27, 1
      %p113 = por %p111, %p112
      %p115 = scmp.ne.s32.totalorder %s100, %s114
      %p116 = scmp.eq.s32.totalorder %s27, 0
      %p117 = por %p115, %p116
      %s119 = sadd.s32 %s118, 1
      %p122 = scmp.eq.s32.totalorder %s21, 1
      %p123 = scmp.ne.s32.totalorder %s118, %s120
      %p124 = scmp.eq.s32.totalorder %s21, 0
      %p125 = por %p123, %p124
      %p126 = scmp.ne.s32.totalorder %s118, %s120
      %p127 = scmp.eq.s32.totalorder %s26, 1
      %p128 = por %p126, %p127
      %p129 = scmp.ne.s32.totalorder %s120, %s121
      %p130 = scmp.eq.s32.totalorder %s26, 0
      %p131 = por %p129, %p130
      %p132 = scmp.ne.s32.totalorder %s120, %s121
      %p133 = scmp.eq.s32.totalorder %s27, 1
      %p134 = por %p132, %p133
      %p136 = scmp.ne.s32.totalorder %s121, %s135
      %p137 = scmp.eq.s32.totalorder %s27, 0
      %p138 = por %p136, %p137
      %s140 = sadd.s32 %s139, 1
      %p143 = scmp.eq.s32.totalorder %s21, 1
      %p144 = scmp.ne.s32.totalorder %s139, %s141
      %p145 = scmp.eq.s32.totalorder %s21, 0
      %p146 = por %p144, %p145
      %p147 = scmp.ne.s32.totalorder %s139, %s141
      %p148 = scmp.eq.s32.totalorder %s26, 1
      %p149 = por %p147, %p148
      %p150 = scmp.ne.s32.totalorder %s141, %s142
      %p151 = scmp.eq.s32.totalorder %s26, 0
      %p152 = por %p150, %p151
      %p153 = scmp.ne.s32.totalorder %s141, %s142
      %p154 = scmp.eq.s32.totalorder %s27, 1
      %p155 = por %p153, %p154
      %p157 = scmp.ne.s32.totalorder %s142, %s156
      %p158 = scmp.eq.s32.totalorder %s27, 0
      %p159 = por %p157, %p158
      %s160 = ssub.s32 %s21, %s28
      %p161 = scmp.eq.s32.totalorder %s160, 0
      %s163 = sadd.s32 %s162, 1
      %s164 = scalar_select %p161, %s162, %s163
      %p167 = pneg %p161
      %p168 = scmp.eq.s32.totalorder %s21, 1
      %p169 = por %p167, %p168
      %p170 = scmp.ne.s32.totalorder %s162, %s165
      %p171 = scmp.eq.s32.totalorder %s21, 0
      %p172 = por %p170, %p171
      %p173 = scmp.ne.s32.totalorder %s162, %s165
      %p174 = scmp.eq.s32.totalorder %s26, 1
      %p175 = por %p173, %p174
      %p176 = scmp.ne.s32.totalorder %s165, %s166
      %p177 = scmp.eq.s32.totalorder %s26, 0
      %p178 = por %p176, %p177
      %p179 = scmp.ne.s32.totalorder %s165, %s166
      %p180 = scmp.eq.s32.totalorder %s27, 1
      %p181 = por %p179, %p180
      %p183 = scmp.ne.s32.totalorder %s166, %s182
      %p184 = scmp.eq.s32.totalorder %s27, 0
      %p185 = por %p183, %p184
      %s186 = ssub.s32 %s21, %s28
      %p187 = scmp.eq.s32.totalorder %s186, 0
      %s189 = sadd.s32 %s188, 1
      %s190 = scalar_select %p187, %s188, %s189
      %p193 = pneg %p187
      %p194 = scmp.eq.s32.totalorder %s21, 1
      %p195 = por %p193, %p194
      %p196 = scmp.ne.s32.totalorder %s188, %s191
      %p197 = scmp.eq.s32.totalorder %s21, 0
      %p198 = por %p196, %p197
      %p199 = scmp.ne.s32.totalorder %s188, %s191
      %p200 = scmp.eq.s32.totalorder %s26, 1
      %p201 = por %p199, %p200
      %p202 = scmp.ne.s32.totalorder %s191, %s192
      %p203 = scmp.eq.s32.totalorder %s26, 0
      %p204 = por %p202, %p203
      %p205 = scmp.ne.s32.totalorder %s191, %s192
      %p206 = scmp.eq.s32.totalorder %s27, 1
      %p207 = por %p205, %p206
      %p209 = scmp.ne.s32.totalorder %s192, %s208
      %p210 = scmp.eq.s32.totalorder %s27, 0
      %p211 = por %p209, %p210
      %s212 = ssub.s32 %s21, %s28
      %p213 = scmp.eq.s32.totalorder %s212, 0
      %s215 = sadd.s32 %s214, 1
      %s216 = scalar_select %p213, %s214, %s215
      %p219 = pneg %p213
      %p220 = scmp.eq.s32.totalorder %s21, 1
      %p221 = por %p219, %p220
      %p222 = scmp.ne.s32.totalorder %s214, %s217
      %p223 = scmp.eq.s32.totalorder %s21, 0
      %p224 = por %p222, %p223
      %p225 = scmp.ne.s32.totalorder %s214, %s217
      %p226 = scmp.eq.s32.totalorder %s26, 1
      %p227 = por %p225, %p226
      %p228 = scmp.ne.s32.totalorder %s217, %s218
      %p229 = scmp.eq.s32.totalorder %s26, 0
      %p230 = por %p228, %p229
      %p231 = scmp.ne.s32.totalorder %s217, %s218
      %p232 = scmp.eq.s32.totalorder %s27, 1
      %p233 = por %p231, %p232
      %p235 = scmp.ne.s32.totalorder %s218, %s234
      %p236 = scmp.eq.s32.totalorder %s27, 0
      %p237 = por %p235, %p236
      %p238 = scmp.le.s32.totalorder 1, %s21
      %p239 = scmp.lt.s32.totalorder %s21, 3
      %p240 = pnand %p238, %p239
      %p241 = pneg %p240
      // Predicated region
      $region9: #{tpu_custom_call.1} parent=5 // pred_check
        _
      $region10: #{tpu_custom_call.1} parent=5 // pred_check_branch
        %243 = sbr.rel (%p240) target = $region12
      $region11: #{tpu_custom_call.1} parent=5 // pred_region
        %s244 = ssub.s32 %s21, 1
        // Predicated region
        $region13: #{tpu_custom_call.1} parent=11 // pred_check
          %p245 = pneg %p68
        $region14: #{tpu_custom_call.1} parent=11 // pred_check_branch
          %247 = sbr.rel (%p245) target = $region16
        $region15: #{tpu_custom_call.1} parent=11 // pred_region
          _
        $region16: #{tpu_custom_call.1} parent=11 // pred_fallthru
          _
        // Predicated region
        $region17: #{tpu_custom_call.1} parent=11 // pred_check
          %p248 = pneg %p89
        $region18: #{tpu_custom_call.1} parent=11 // pred_check_branch
          %250 = sbr.rel (%p248) target = $region20
        $region19: #{tpu_custom_call.1} parent=11 // pred_region
          _
        $region20: #{tpu_custom_call.1} parent=11 // pred_fallthru
          _
        // Predicated region
        $region21: #{tpu_custom_call.1} parent=11 // pred_check
          %p251 = pneg %p110
        $region22: #{tpu_custom_call.1} parent=11 // pred_check_branch
          %253 = sbr.rel (%p251) target = $region24
        $region23: #{tpu_custom_call.1} parent=11 // pred_region
          _
        $region24: #{tpu_custom_call.1} parent=11 // pred_fallthru
          _
        // Predicated region
        $region25: #{tpu_custom_call.1} parent=11 // pred_check
          %p254 = pneg %p131
        $region26: #{tpu_custom_call.1} parent=11 // pred_check_branch
          %256 = sbr.rel (%p254) target = $region28
        $region27: #{tpu_custom_call.1} parent=11 // pred_region
          _
        $region28: #{tpu_custom_call.1} parent=11 // pred_fallthru
          _
        // Predicated region
        $region29: #{tpu_custom_call.1} parent=11 // pred_check
          %p257 = pneg %p152
        $region30: #{tpu_custom_call.1} parent=11 // pred_check_branch
          %259 = sbr.rel (%p257) target = $region32
        $region31: #{tpu_custom_call.1} parent=11 // pred_region
          _
        $region32: #{tpu_custom_call.1} parent=11 // pred_fallthru
          _
      $region12: #{tpu_custom_call.1} parent=5 // pred_fallthru
        _
      %p260 = scmp.lt.s32.totalorder %s21, 2
      // Predicated region
      $region33: #{tpu_custom_call.1} parent=5 // pred_check
        %p261 = pneg %p260
      $region34: #{tpu_custom_call.1} parent=5 // pred_check_branch
        %263 = sbr.rel (%p261) target = $region36
      $region35: #{tpu_custom_call.1} parent=5 // pred_region
        // Predicated region
        $region37: #{tpu_custom_call.1} parent=35 // pred_check
          %p264 = pneg %p41
        $region38: #{tpu_custom_call.1} parent=35 // pred_check_branch
          %266 = sbr.rel (%p264) target = $region40
        $region39: #{tpu_custom_call.1} parent=35 // pred_region
          %s267 = sand.u32 %s31, 1
          %s268 = scalar_lea.sflag [#allocation3], %s267
          %s269 = sand.u32 %s31, 1
          %s270 = smul.addr %s269, 208
          %s271 = scalar_lea.vmem [#allocation2], %s270
          %s272 = smul.u32 13, %s21
          %s273 = ssub.s32 25, %s272
          %p274 = scmp.lt.s32.totalorder %s273, 13
          %s275 = scalar_select %p274, %s273, 13
          %s276 = smul.u32 128, %s275
          %s277 = smul.u32 %s276, 2
          %s279 = ssub.s32 3328, %s277
          %280 = vsyncadd %s268, %s279
          %p281 = scmp.ne.s32.totalorder 0, %s277
          %s282 = smul.addr %s272, 2
          %s283 = smul.addr %s282, 128
          %s284 = scalar_lea.hbm %s0, %s283
          %s285 = smul.u32 16, %s275
          %s286 = sshll.u32 %s271, 4
          %s287 = int_to_ptr.vmem [resolvable:$true] %s286
          %s288 = sshll.u32 %s285, 4
          %292 = dma.hbm_to_vmem [thread:$0]  (%p281), %s284, %s288, %s287, %s268, 256, 256, 16
        $region40: #{tpu_custom_call.1} parent=35 // pred_fallthru
          _
        // Predicated region
        $region41: #{tpu_custom_call.1} parent=35 // pred_check
          %p293 = pneg %p172
        $region42: #{tpu_custom_call.1} parent=35 // pred_check_branch
          %295 = sbr.rel (%p293) target = $region44
        $region43: #{tpu_custom_call.1} parent=35 // pred_region
          %s296 = smul.u32 13, %s21
          %s297 = ssub.s32 25, %s296
          %p298 = scmp.lt.s32.totalorder %s297, 13
          %s299 = scalar_select %p298, %s297, 13
          %s300 = smul.u32 128, %s299
          %p301 = scmp.lt.s32.totalorder %s296, 24
          %s302 = scalar_select %p301, %s296, 24
          %s303 = smul.addr %s302, 8
          %s304 = scalar_lea.vmem %s6, %s303
          %s305 = smul.u32 13, %s21
          %s306 = ssub.s32 25, %s305
          %p307 = scmp.lt.s32.totalorder %s306, 13
          %s308 = scalar_select %p307, %s306, 13
          %s309 = smul.u32 128, %s308
        $region44: #{tpu_custom_call.1} parent=35 // pred_fallthru
          _
      $region36: #{tpu_custom_call.1} parent=5 // pred_fallthru
        _
      %p310 = scmp.le.s32.totalorder 1, %s21
      %p311 = scmp.lt.s32.totalorder %s21, 3
      %p312 = pnand %p310, %p311
      %p313 = pneg %p312
      // Predicated region
      $region45: #{tpu_custom_call.1} parent=5 // pred_check
        _
      $region46: #{tpu_custom_call.1} parent=5 // pred_check_branch
        %315 = sbr.rel (%p312) target = $region48
      $region47: #{tpu_custom_call.1} parent=5 // pred_region
        %s316 = ssub.s32 %s21, 1
        %s317 = sand.u32 %s34, 1
        %s318 = scalar_lea.sflag [#allocation3], %s317
        %s319 = sand.u32 %s34, 1
        %s320 = smul.addr %s319, 208
        %s321 = scalar_lea.vmem [#allocation2], %s320
        // Predicated region
        $region49: #{tpu_custom_call.1} parent=47 // pred_check
          %p322 = pneg %p47
        $region50: #{tpu_custom_call.1} parent=47 // pred_check_branch
          %324 = sbr.rel (%p322) target = $region52
        $region51: #{tpu_custom_call.1} parent=47 // pred_region
          %325 = dma.done %s318, 3328
        $region52: #{tpu_custom_call.1} parent=47 // pred_fallthru
          _
        %s326 = sand.u32 %s34, 1
        %s327 = scalar_lea.sflag [#allocation3], %s326
        %s328 = sand.u32 %s34, 1
        %s329 = smul.addr %s328, 208
        %s330 = scalar_lea.vmem [#allocation2], %s329
        %p331 = pneg %p47
        %p332 = pneg %p44
        %p333 = pneg %p68
        %p334 = pneg %p65
        %p335 = pneg %p89
        %p336 = pneg %p86
        %p337 = pneg %p110
        %p338 = pneg %p107
        %p339 = pneg %p131
        %p340 = pneg %p128
        %p341 = pneg %p152
        %p342 = pneg %p149
        %s343 = smul.u32 13, %s26
        %s344 = ssub.s32 25, %s343
        %p345 = scmp.lt.s32.totalorder %s344, 13
        %s346 = scalar_select %p345, %s344, 13
        %s347 = smul.u32 128, %s346
        %p348 = scmp.lt.s32.totalorder %s343, 24
        %s349 = scalar_select %p348, %s343, 24
        %s350 = smul.addr %s349, 8
        %s351 = scalar_lea.vmem %s6, %s350
        %p352 = pneg %p178
        %p353 = pneg %p175
        %p354 = pneg %p204
        %p355 = pneg %p201
        %s356 = sand.u32 %s191, 1
        %s357 = scalar_lea.sflag [#allocation4], %s356
        %s358 = sand.u32 %s191, 1
        %s359 = smul.addr %s358, 104
        %s360 = scalar_lea.vmem [#allocation5], %s359
        %p361 = pneg %p230
        %p362 = pneg %p227
        %s363 = sand.u32 %s217, 1
        %s364 = sand.u32 %s217, 1
        %s365 = smul.addr %s364, 104
        %s366 = scalar_lea.vmem [#allocation6], %s365
        %s367 = smul.u32 13, %s26
        %s368 = ssub.s32 25, %s367
        %p369 = scmp.lt.s32.totalorder %s368, 13
        %s370 = scalar_select %p369, %s368, 13
        %s371 = smul.u32 128, %s370
        %s372 = smul.u32 %s371, 2
        %s373 = smul.u32 13, %s26
        %s374 = ssub.s32 25, %s373
        %p375 = scmp.lt.s32.totalorder %s374, 13
        %s376 = scalar_select %p375, %s374, 13
        %s377 = smul.u32 128, %s376
        %p378 = scmp.lt.s32.totalorder %s373, 24
        %s379 = scalar_select %p378, %s373, 24
        %s380 = smul.addr %s379, 8
        %s381 = scalar_lea.vmem %s6, %s380
        %s382 = smul.u32 13, %s26
        %s383 = ssub.s32 25, %s382
        %p384 = scmp.lt.s32.totalorder %s383, 13
        %s385 = scalar_select %p384, %s383, 13
        %s386 = smul.u32 128, %s385
        %s387 = smul.u32 13, %s26
        %s388 = ssub.s32 25, %s387
        %p389 = scmp.lt.s32.totalorder %s388, 13
        %s390 = scalar_select %p389, %s388, 13
        %s391 = smul.u32 128, %s390
        %s392 = smul.u32 13, %s26
        %s393 = ssub.s32 25, %s392
        %p394 = scmp.lt.s32.totalorder %s393, 13
        %s395 = scalar_select %p394, %s393, 13
        %s396 = smul.u32 128, %s395
        %v398 = vld [vmem:[%s321] sm:$0xff]
        %v399 = vld [vmem:[%s321 + $0x8] sm:$0xff]
        %v400 = vld [vmem:[%s321 + $0x10] sm:$0xff]
        %v401 = vld [vmem:[%s321 + $0x18] sm:$0xff]
        %v402 = vld [vmem:[%s321 + $0x20] sm:$0xff]
        %v403 = vld [vmem:[%s321 + $0x28] sm:$0xff]
        %v404 = vld [vmem:[%s321 + $0x30] sm:$0xff]
        %v405 = vld [vmem:[%s321 + $0x38] sm:$0xff]
        %v406 = vld [vmem:[%s321 + $0x40] sm:$0xff]
        %v407 = vld [vmem:[%s321 + $0x48] sm:$0xff]
        %v408 = vld [vmem:[%s321 + $0x50] sm:$0xff]
        %v409 = vld [vmem:[%s321 + $0x58] sm:$0xff]
        %v410 = vld [vmem:[%s321 + $0x60] sm:$0xff]
        %v411 = vld [vmem:[%s321 + $0x68] sm:$0xff]
        %v412 = vld [vmem:[%s321 + $0x70] sm:$0xff]
        %v413 = vld [vmem:[%s321 + $0x78] sm:$0xff]
        %v414 = vld [vmem:[%s321 + $0x80] sm:$0xff]
        %v415 = vld [vmem:[%s321 + $0x88] sm:$0xff]
        %v416 = vld [vmem:[%s321 + $0x90] sm:$0xff]
        %v417 = vld [vmem:[%s321 + $0x98] sm:$0xff]
        %v418 = vld [vmem:[%s321 + $0xa0] sm:$0xff]
        %v419 = vld [vmem:[%s321 + $0xa8] sm:$0xff]
        %v420 = vld [vmem:[%s321 + $0xb0] sm:$0xff]
        %v421 = vld [vmem:[%s321 + $0xb8] sm:$0xff]
        %v422 = vld [vmem:[%s321 + $0xc0] sm:$0xff]
        %v423 = vld [vmem:[%s321 + $0xc8] sm:$0xff]
        %v424 = vpack.c.bf16 %v400, %v398
        %v425 = vpack.c.bf16 %v401, %v399
        %v426 = vpack.c.bf16 %v404, %v402
        %v427 = vpack.c.bf16 %v405, %v403
        %v428 = vpack.c.bf16 %v408, %v406
        %v429 = vpack.c.bf16 %v409, %v407
        %v430 = vpack.c.bf16 %v412, %v410
        %v431 = vpack.c.bf16 %v413, %v411
        %v432 = vpack.c.bf16 %v416, %v414
        %v433 = vpack.c.bf16 %v417, %v415
        %v434 = vpack.c.bf16 %v420, %v418
        %v435 = vpack.c.bf16 %v421, %v419
        %v436 = vpack.c.bf16 %v422, %v422
        %v437 = vpack.c.bf16 %v423, %v423
        %v438 = vld [vmem:[%s1] sm:$0xff]
        %v439 = vld [vmem:[%s1 + $0x8] sm:$0xff]
        %v440 = vld [vmem:[%s1 + $0x10] sm:$0xff]
        %v441 = vld [vmem:[%s1 + $0x18] sm:$0xff]
        %v442 = vld [vmem:[%s1 + $0x20] sm:$0xff]
        %v443 = vld [vmem:[%s1 + $0x28] sm:$0xff]
        %v444 = vld [vmem:[%s1 + $0x30] sm:$0xff]
        %v445 = vld [vmem:[%s1 + $0x38] sm:$0xff]
        %v446 = vld [vmem:[%s1 + $0x40] sm:$0xff]
        %v447 = vld [vmem:[%s1 + $0x48] sm:$0xff]
        %v448 = vld [vmem:[%s1 + $0x50] sm:$0xff]
        %v449 = vld [vmem:[%s1 + $0x58] sm:$0xff]
        %v450 = vld [vmem:[%s1 + $0x60] sm:$0xff]
        %v451 = vld [vmem:[%s1 + $0x68] sm:$0xff]
        %v452 = vld [vmem:[%s1 + $0x70] sm:$0xff]
        %v453 = vld [vmem:[%s1 + $0x78] sm:$0xff]
        %v454 = vld [vmem:[%s1 + $0x80] sm:$0xff]
        %v455 = vld [vmem:[%s1 + $0x88] sm:$0xff]
        %v456 = vld [vmem:[%s1 + $0x90] sm:$0xff]
        %v457 = vld [vmem:[%s1 + $0x98] sm:$0xff]
        %v458 = vld [vmem:[%s1 + $0xa0] sm:$0xff]
        %v459 = vld [vmem:[%s1 + $0xa8] sm:$0xff]
        %v460 = vld [vmem:[%s1 + $0xb0] sm:$0xff]
        %v461 = vld [vmem:[%s1 + $0xb8] sm:$0xff]
        %v462 = vld [vmem:[%s1 + $0xc0] sm:$0xff]
        %v463 = vld [vmem:[%s1 + $0xc8] sm:$0xff]
        %v464 = vld [vmem:[%s1 + $0xd0] sm:$0xff]
        %v465 = vld [vmem:[%s1 + $0xd8] sm:$0xff]
        %v466 = vld [vmem:[%s1 + $0xe0] sm:$0xff]
        %v467 = vld [vmem:[%s1 + $0xe8] sm:$0xff]
        %v468 = vld [vmem:[%s1 + $0xf0] sm:$0xff]
        %v469 = vld [vmem:[%s1 + $0xf8] sm:$0xff]
        %v502 = vunpack.c.l.b16 %v438
        %v503 = vunpack.c.h.b16 %v438
        %v504 = vunpack.c.l.b16 %v439
        %v505 = vunpack.c.h.b16 %v439
        %v506 = vunpack.c.l.b16 %v440
        %v507 = vunpack.c.h.b16 %v440
        %v508 = vunpack.c.l.b16 %v441
        %v509 = vunpack.c.h.b16 %v441
        %v510 = vunpack.c.l.b16 %v442
        %v511 = vunpack.c.h.b16 %v442
        %v512 = vunpack.c.l.b16 %v443
        %v513 = vunpack.c.h.b16 %v443
        %v514 = vunpack.c.l.b16 %v444
        %v515 = vunpack.c.h.b16 %v444
        %v516 = vunpack.c.l.b16 %v445
        %v517 = vunpack.c.h.b16 %v445
        %v518 = vunpack.c.l.b16 %v446
        %v519 = vunpack.c.h.b16 %v446
        %v520 = vunpack.c.l.b16 %v447
        %v521 = vunpack.c.h.b16 %v447
        %v522 = vunpack.c.l.b16 %v448
        %v523 = vunpack.c.h.b16 %v448
        %v524 = vunpack.c.l.b16 %v449
        %v525 = vunpack.c.h.b16 %v449
        %v526 = vunpack.c.l.b16 %v450
        %v527 = vunpack.c.h.b16 %v450
        %v528 = vunpack.c.l.b16 %v451
        %v529 = vunpack.c.h.b16 %v451
        %v530 = vunpack.c.l.b16 %v452
        %v531 = vunpack.c.h.b16 %v452
        %v532 = vunpack.c.l.b16 %v453
        %v533 = vunpack.c.h.b16 %v453
        %v534 = vunpack.c.l.b16 %v454
        %v535 = vunpack.c.h.b16 %v454
        %v536 = vunpack.c.l.b16 %v455
        %v537 = vunpack.c.h.b16 %v455
        %v538 = vunpack.c.l.b16 %v456
        %v539 = vunpack.c.h.b16 %v456
        %v540 = vunpack.c.l.b16 %v457
        %v541 = vunpack.c.h.b16 %v457
        %v542 = vunpack.c.l.b16 %v458
        %v543 = vunpack.c.h.b16 %v458
        %v544 = vunpack.c.l.b16 %v459
        %v545 = vunpack.c.h.b16 %v459
        %v546 = vunpack.c.l.b16 %v460
        %v547 = vunpack.c.h.b16 %v460
        %v548 = vunpack.c.l.b16 %v461
        %v549 = vunpack.c.h.b16 %v461
        %v550 = vunpack.c.l.b16 %v462
        %v551 = vunpack.c.h.b16 %v462
        %v552 = vunpack.c.l.b16 %v463
        %v553 = vunpack.c.h.b16 %v463
        %v554 = vunpack.c.l.b16 %v464
        %v555 = vunpack.c.h.b16 %v464
        %v556 = vunpack.c.l.b16 %v465
        %v557 = vunpack.c.h.b16 %v465
        %v558 = vunpack.c.l.b16 %v466
        %v559 = vunpack.c.h.b16 %v466
        %v560 = vunpack.c.l.b16 %v467
        %v561 = vunpack.c.h.b16 %v467
        %v562 = vunpack.c.l.b16 %v468
        %v563 = vunpack.c.h.b16 %v468
        %v564 = vunpack.c.l.b16 %v469
        %v565 = vunpack.c.h.b16 %v469
        %v566 = vpack.c.b16 %v504, %v502
        %v567 = vpack.c.b16 %v505, %v503
        %v568 = vpack.c.b16 %v508, %v506
        %v569 = vpack.c.b16 %v509, %v507
        %v570 = vpack.c.b16 %v512, %v510
        %v571 = vpack.c.b16 %v513, %v511
        %v572 = vpack.c.b16 %v516, %v514
        %v573 = vpack.c.b16 %v517, %v515
        %v574 = vpack.c.b16 %v520, %v518
        %v575 = vpack.c.b16 %v521, %v519
        %v576 = vpack.c.b16 %v524, %v522
        %v577 = vpack.c.b16 %v525, %v523
        %v578 = vpack.c.b16 %v528, %v526
        %v579 = vpack.c.b16 %v529, %v527
        %v580 = vpack.c.b16 %v532, %v530
        %v581 = vpack.c.b16 %v533, %v531
        %v582 = vpack.c.b16 %v536, %v534
        %v583 = vpack.c.b16 %v537, %v535
        %v584 = vpack.c.b16 %v540, %v538
        %v585 = vpack.c.b16 %v541, %v539
        %v586 = vpack.c.b16 %v544, %v542
        %v587 = vpack.c.b16 %v545, %v543
        %v588 = vpack.c.b16 %v548, %v546
        %v589 = vpack.c.b16 %v549, %v547
        %v590 = vpack.c.b16 %v552, %v550
        %v591 = vpack.c.b16 %v553, %v551
        %v592 = vpack.c.b16 %v556, %v554
        %v593 = vpack.c.b16 %v557, %v555
        %v594 = vpack.c.b16 %v560, %v558
        %v595 = vpack.c.b16 %v561, %v559
        %v596 = vpack.c.b16 %v564, %v562
        %v597 = vpack.c.b16 %v565, %v563
        %630 = vmatprep.subr.bf16.mxu0 %v567
        %631 = vmatpush1.bf16.msra.mxu0 %v566
        %632 = vmatprep.subr.bf16.mxu0 %v569
        %633 = vmatpush1.bf16.msra.mxu0 %v568
        %634 = vmatprep.subr.bf16.mxu0 %v571
        %635 = vmatpush1.bf16.msra.mxu0 %v570
        %636 = vmatprep.subr.bf16.mxu0 %v573
        %637 = vmatpush1.bf16.msra.mxu0 %v572
        %638 = vmatprep.subr.bf16.mxu0 %v575
        %639 = vmatpush1.bf16.msra.mxu0 %v574
        %640 = vmatprep.subr.bf16.mxu0 %v577
        %641 = vmatpush1.bf16.msra.mxu0 %v576
        %642 = vmatprep.subr.bf16.mxu0 %v579
        %643 = vmatpush1.bf16.msra.mxu0 %v578
        %644 = vmatprep.subr.bf16.mxu0 %v581
        %645 = vmatpush1.bf16.msra.mxu0 %v580
        %646 = vmatprep.subr.bf16.mxu0 %v583
        %647 = vmatpush1.bf16.msra.mxu0 %v582
        %648 = vmatprep.subr.bf16.mxu0 %v585
        %649 = vmatpush1.bf16.msra.mxu0 %v584
        %650 = vmatprep.subr.bf16.mxu0 %v587
        %651 = vmatpush1.bf16.msra.mxu0 %v586
        %652 = vmatprep.subr.bf16.mxu0 %v589
        %653 = vmatpush1.bf16.msra.mxu0 %v588
        %654 = vmatprep.subr.bf16.mxu0 %v591
        %655 = vmatpush1.bf16.msra.mxu0 %v590
        %656 = vmatprep.subr.bf16.mxu0 %v593
        %657 = vmatpush1.bf16.msra.mxu0 %v592
        %658 = vmatprep.subr.bf16.mxu0 %v595
        %659 = vmatpush1.bf16.msra.mxu0 %v594
        %660 = vmatprep.subr.bf16.mxu0 %v597
        %661 = vmatpush1.bf16.msra.mxu0 %v596
        %662 = vmatprep.mubr.bf16.mxu0 %v425
        %663 = vmatmul.mubr.bf16.gmra.mrb[0].mxu0 %v424
        %v664 = vpop.f32.mrb[0].mxu0
        %v665 = vadd.f32 0.0, %v664
        %v666 = vpop.f32.mrb[0].mxu0
        %v667 = vadd.f32 0.0, %v666
        %v668 = vpop.f32.mrb[0].mxu0
        %v669 = vadd.f32 0.0, %v668
        %v670 = vpop.f32.mrb[0].mxu0
        %v671 = vadd.f32 0.0, %v670
        %672 = vmatprep.mubr.bf16.mxu0 %v427
        %673 = vmatmul.mubr.bf16.gmra.mrb[0].mxu0 %v426
        %v674 = vpop.f32.mrb[0].mxu0
        %v675 = vadd.f32 0.0, %v674
        %v676 = vpop.f32.mrb[0].mxu0
        %v677 = vadd.f32 0.0, %v676
        %v678 = vpop.f32.mrb[0].mxu0
        %v679 = vadd.f32 0.0, %v678
        %v680 = vpop.f32.mrb[0].mxu0
        %v681 = vadd.f32 0.0, %v680
        %682 = vmatprep.mubr.bf16.mxu0 %v429
        %683 = vmatmul.mubr.bf16.gmra.mrb[0].mxu0 %v428
        %v684 = vpop.f32.mrb[0].mxu0
        %v685 = vadd.f32 0.0, %v684
        %v686 = vpop.f32.mrb[0].mxu0
        %v687 = vadd.f32 0.0, %v686
        %v688 = vpop.f32.mrb[0].mxu0
        %v689 = vadd.f32 0.0, %v688
        %v690 = vpop.f32.mrb[0].mxu0
        %v691 = vadd.f32 0.0, %v690
        %692 = vmatprep.mubr.bf16.mxu0 %v431
        %693 = vmatmul.mubr.bf16.gmra.mrb[0].mxu0 %v430
        %v694 = vpop.f32.mrb[0].mxu0
        %v695 = vadd.f32 0.0, %v694
        %v696 = vpop.f32.mrb[0].mxu0
        %v697 = vadd.f32 0.0, %v696
        %v698 = vpop.f32.mrb[0].mxu0
        %v699 = vadd.f32 0.0, %v698
        %v700 = vpop.f32.mrb[0].mxu0
        %v701 = vadd.f32 0.0, %v700
        %702 = vmatprep.mubr.bf16.mxu0 %v433
        %703 = vmatmul.mubr.bf16.gmra.mrb[0].mxu0 %v432
        %v704 = vpop.f32.mrb[0].mxu0
        %v705 = vadd.f32 0.0, %v704
        %v706 = vpop.f32.mrb[0].mxu0
        %v707 = vadd.f32 0.0, %v706
        %v708 = vpop.f32.mrb[0].mxu0
        %v709 = vadd.f32 0.0, %v708
        %v710 = vpop.f32.mrb[0].mxu0
        %v711 = vadd.f32 0.0, %v710
        %712 = vmatprep.mubr.bf16.mxu0 %v435
        %713 = vmatmul.mubr.bf16.gmra.mrb[0].mxu0 %v434
        %v714 = vpop.f32.mrb[0].mxu0
        %v715 = vadd.f32 0.0, %v714
        %v716 = vpop.f32.mrb[0].mxu0
        %v717 = vadd.f32 0.0, %v716
        %v718 = vpop.f32.mrb[0].mxu0
        %v719 = vadd.f32 0.0, %v718
        %v720 = vpop.f32.mrb[0].mxu0
        %v721 = vadd.f32 0.0, %v720
        %722 = vmatprep.mubr.bf16.mxu0 %v437
        %723 = vmatmul.mubr.bf16.gmra.mrb[0].mxu0 %v436
        %v724 = vpop.f32.mrb[0].mxu0
        %v725 = vadd.f32 0.0, %v724
        %v726 = vpop.f32.mrb[0].mxu0
        %v727 = vadd.f32 0.0, %v726
        %v728 = vpop.f32.mrb[0].mxu0
        %v729 = vpop.f32.mrb[0].mxu0
        %730 = vdwg.mxu0
        %v731 = vld [vmem:[%s5] sm:$0x1]
        %v733 = vlaneseq
        %v734 = vshrl.u32 %v733, 7
        %v735 = vsub.s32 0, %v734
        %v736 = vrot.slane %v731, %v735
        %v738 = vadd.f32 %v667, %v736
        %v739 = vadd.f32 %v671, %v736
        %v740 = vadd.f32 %v677, %v736
        %v741 = vadd.f32 %v681, %v736
        %v742 = vadd.f32 %v687, %v736
        %v743 = vadd.f32 %v691, %v736
        %v744 = vadd.f32 %v697, %v736
        %v745 = vadd.f32 %v701, %v736
        %v746 = vadd.f32 %v707, %v736
        %v747 = vadd.f32 %v711, %v736
        %v748 = vadd.f32 %v717, %v736
        %v749 = vadd.f32 %v721, %v736
        %v750 = vadd.f32 %v727, %v736
        %751 = vst [vmem:[%s360] sm:$0xff] %v738
        %752 = vst [vmem:[%s360 + $0x8] sm:$0xff] %v739
        %753 = vst [vmem:[%s360 + $0x10] sm:$0xff] %v740
        %754 = vst [vmem:[%s360 + $0x18] sm:$0xff] %v741
        %755 = vst [vmem:[%s360 + $0x20] sm:$0xff] %v742
        %756 = vst [vmem:[%s360 + $0x28] sm:$0xff] %v743
        %757 = vst [vmem:[%s360 + $0x30] sm:$0xff] %v744
        %758 = vst [vmem:[%s360 + $0x38] sm:$0xff] %v745
        %759 = vst [vmem:[%s360 + $0x40] sm:$0xff] %v746
        %760 = vst [vmem:[%s360 + $0x48] sm:$0xff] %v747
        %761 = vst [vmem:[%s360 + $0x50] sm:$0xff] %v748
        %762 = vst [vmem:[%s360 + $0x58] sm:$0xff] %v749
        %763 = vst [vmem:[%s360 + $0x60] sm:$0xff] %v750
        %v764 = vld [vmem:[%s2] sm:$0x1]
        %v766 = vlaneseq
        %v767 = vshrl.u32 %v766, 7
        %v768 = vsub.s32 0, %v767
        %v769 = vrot.slane %v764, %v768
        %v771 = vadd.f32 %v665, %v769
        %v772 = vadd.f32 %v669, %v769
        %v773 = vadd.f32 %v675, %v769
        %v774 = vadd.f32 %v679, %v769
        %v775 = vadd.f32 %v685, %v769
        %v776 = vadd.f32 %v689, %v769
        %v777 = vadd.f32 %v695, %v769
        %v778 = vadd.f32 %v699, %v769
        %v779 = vadd.f32 %v705, %v769
        %v780 = vadd.f32 %v709, %v769
        %v781 = vadd.f32 %v715, %v769
        %v782 = vadd.f32 %v719, %v769
        %v783 = vadd.f32 %v725, %v769
        %v784 = vmax.f32 %v771, 0.0
        %v785 = vmax.f32 %v772, 0.0
        %v786 = vmax.f32 %v773, 0.0
        %v787 = vmax.f32 %v774, 0.0
        %v788 = vmax.f32 %v775, 0.0
        %v789 = vmax.f32 %v776, 0.0
        %v790 = vmax.f32 %v777, 0.0
        %v791 = vmax.f32 %v778, 0.0
        %v792 = vmax.f32 %v779, 0.0
        %v793 = vmax.f32 %v780, 0.0
        %v794 = vmax.f32 %v781, 0.0
        %v795 = vmax.f32 %v782, 0.0
        %v796 = vmax.f32 %v783, 0.0
        %v797 = vpack.c.bf16 %v785, %v784
        %v798 = vpack.c.bf16 %v787, %v786
        %v799 = vpack.c.bf16 %v789, %v788
        %v800 = vpack.c.bf16 %v791, %v790
        %v801 = vpack.c.bf16 %v793, %v792
        %v802 = vpack.c.bf16 %v795, %v794
        %v803 = vpack.c.bf16 %v796, %v796
        %v804 = vld [vmem:[%s3] sm:$0xf]
        %v805 = vld [vmem:[%s3 + $0x4] sm:$0xf]
        %v806 = vld [vmem:[%s3 + $0x8] sm:$0xf]
        %v807 = vld [vmem:[%s3 + $0xc] sm:$0xf]
        %v808 = vld [vmem:[%s3 + $0x10] sm:$0xf]
        %v809 = vld [vmem:[%s3 + $0x14] sm:$0xf]
        %v810 = vld [vmem:[%s3 + $0x18] sm:$0xf]
        %v811 = vld [vmem:[%s3 + $0x1c] sm:$0xf]
        %v812 = vld [vmem:[%s3 + $0x20] sm:$0xf]
        %v813 = vld [vmem:[%s3 + $0x24] sm:$0xf]
        %v814 = vld [vmem:[%s3 + $0x28] sm:$0xf]
        %v815 = vld [vmem:[%s3 + $0x2c] sm:$0xf]
        %v816 = vld [vmem:[%s3 + $0x30] sm:$0xf]
        %v817 = vld [vmem:[%s3 + $0x34] sm:$0xf]
        %v818 = vld [vmem:[%s3 + $0x38] sm:$0xf]
        %v819 = vld [vmem:[%s3 + $0x3c] sm:$0xf]
        %v820 = vld [vmem:[%s4] sm:$0x1]
        %v822 = vlaneseq
        %v823 = vshrl.u32 %v822, 7
        %v824 = vsub.s32 0, %v823
        %v825 = vrot.slane %v820, %v824
        %v843 = vunpack.c.l.b16 %v804
        %v844 = vunpack.c.l.b16 %v805
        %v845 = vunpack.c.l.b16 %v806
        %v846 = vunpack.c.l.b16 %v807
        %v847 = vunpack.c.l.b16 %v808
        %v848 = vunpack.c.l.b16 %v809
        %v849 = vunpack.c.l.b16 %v810
        %v850 = vunpack.c.l.b16 %v811
        %v851 = vunpack.c.l.b16 %v812
        %v852 = vunpack.c.l.b16 %v813
        %v853 = vunpack.c.l.b16 %v814
        %v854 = vunpack.c.l.b16 %v815
        %v855 = vunpack.c.l.b16 %v816
        %v856 = vunpack.c.l.b16 %v817
        %v857 = vunpack.c.l.b16 %v818
        %v858 = vunpack.c.l.b16 %v819
        %v859 = vpack.c.b16 %v844, %v843
        %v860 = vpack.c.b16 %v846, %v845
        %v861 = vpack.c.b16 %v848, %v847
        %v862 = vpack.c.b16 %v850, %v849
        %v863 = vpack.c.b16 %v852, %v851
        %v864 = vpack.c.b16 %v854, %v853
        %v865 = vpack.c.b16 %v856, %v855
        %v866 = vpack.c.b16 %v858, %v857
        %875 = vmatprep.subr.bf16.mxu0 0
        %876 = vmatpush1.bf16.msra.mxu0 %v859
        %877 = vmatprep.subr.bf16.mxu0 0
        %878 = vmatpush1.bf16.msra.mxu0 %v860
        %879 = vmatprep.subr.bf16.mxu0 0
        %880 = vmatpush1.bf16.msra.mxu0 %v861
        %881 = vmatprep.subr.bf16.mxu0 0
        %882 = vmatpush1.bf16.msra.mxu0 %v862
        %883 = vmatprep.subr.bf16.mxu0 0
        %884 = vmatpush1.bf16.msra.mxu0 %v863
        %885 = vmatprep.subr.bf16.mxu0 0
        %886 = vmatpush1.bf16.msra.mxu0 %v864
        %887 = vmatprep.subr.bf16.mxu0 0
        %888 = vmatpush1.bf16.msra.mxu0 %v865
        %889 = vmatprep.subr.bf16.mxu0 0
        %890 = vmatpush1.bf16.msra.mxu0 %v866
        %891 = vmatprep.subr.bf16.mxu0 0
        %892 = vmatpush1.bf16.msra.mxu0 0
        %893 = vmatprep.subr.bf16.mxu0 0
        %894 = vmatpush1.bf16.msra.mxu0 0
        %895 = vmatprep.subr.bf16.mxu0 0
        %896 = vmatpush1.bf16.msra.mxu0 0
        %897 = vmatprep.subr.bf16.mxu0 0
        %898 = vmatpush1.bf16.msra.mxu0 0
        %899 = vmatprep.subr.bf16.mxu0 0
        %900 = vmatpush1.bf16.msra.mxu0 0
        %901 = vmatprep.subr.bf16.mxu0 0
        %902 = vmatpush1.bf16.msra.mxu0 0
        %903 = vmatprep.subr.bf16.mxu0 0
        %904 = vmatpush1.bf16.msra.mxu0 0
        %905 = vmatprep.subr.bf16.mxu0 0
        %906 = vmatpush1.bf16.msra.mxu0 0
        %907 = vmatprep.mubr.bf16.mxu0 0
        %908 = vmatmul.mubr.bf16.gmra.mrb[0].mxu0 %v797
        %v909 = vpop.f32.mrb[0].mxu0
        %v910 = vadd.f32 %v825, %v909
        %v911 = vpop.f32.mrb[0].mxu0
        %v912 = vpop.f32.mrb[0].mxu0
        %v913 = vadd.f32 %v825, %v912
        %v914 = vpop.f32.mrb[0].mxu0
        %915 = vmatprep.mubr.bf16.mxu0 0
        %916 = vmatmul.mubr.bf16.gmra.mrb[0].mxu0 %v798
        %v917 = vpop.f32.mrb[0].mxu0
        %v918 = vadd.f32 %v825, %v917
        %v919 = vpop.f32.mrb[0].mxu0
        %v920 = vpop.f32.mrb[0].mxu0
        %v921 = vadd.f32 %v825, %v920
        %v922 = vpop.f32.mrb[0].mxu0
        %923 = vmatprep.mubr.bf16.mxu0 0
        %924 = vmatmul.mubr.bf16.gmra.mrb[0].mxu0 %v799
        %v925 = vpop.f32.mrb[0].mxu0
        %v926 = vadd.f32 %v825, %v925
        %v927 = vpop.f32.mrb[0].mxu0
        %v928 = vpop.f32.mrb[0].mxu0
        %v929 = vadd.f32 %v825, %v928
        %v930 = vpop.f32.mrb[0].mxu0
        %931 = vmatprep.mubr.bf16.mxu0 0
        %932 = vmatmul.mubr.bf16.gmra.mrb[0].mxu0 %v800
        %v933 = vpop.f32.mrb[0].mxu0
        %v934 = vadd.f32 %v825, %v933
        %v935 = vpop.f32.mrb[0].mxu0
        %v936 = vpop.f32.mrb[0].mxu0
        %v937 = vadd.f32 %v825, %v936
        %v938 = vpop.f32.mrb[0].mxu0
        %939 = vmatprep.mubr.bf16.mxu0 0
        %940 = vmatmul.mubr.bf16.gmra.mrb[0].mxu0 %v801
        %v941 = vpop.f32.mrb[0].mxu0
        %v942 = vadd.f32 %v825, %v941
        %v943 = vpop.f32.mrb[0].mxu0
        %v944 = vpop.f32.mrb[0].mxu0
        %v945 = vadd.f32 %v825, %v944
        %v946 = vpop.f32.mrb[0].mxu0
        %947 = vmatprep.mubr.bf16.mxu0 0
        %948 = vmatmul.mubr.bf16.gmra.mrb[0].mxu0 %v802
        %v949 = vpop.f32.mrb[0].mxu0
        %v950 = vadd.f32 %v825, %v949
        %v951 = vpop.f32.mrb[0].mxu0
        %v952 = vpop.f32.mrb[0].mxu0
        %v953 = vadd.f32 %v825, %v952
        %v954 = vpop.f32.mrb[0].mxu0
        %955 = vmatprep.mubr.bf16.mxu0 0
        %956 = vmatmul.mubr.bf16.gmra.mrb[0].mxu0 %v803
        %v957 = vpop.f32.mrb[0].mxu0
        %v958 = vadd.f32 %v825, %v957
        %v959 = vpop.f32.mrb[0].mxu0
        %v960 = vpop.f32.mrb[0].mxu0
        %v961 = vpop.f32.mrb[0].mxu0
        %962 = vdwg.mxu0
        %v963 = vld [vmem:[%s381] sm:$0xff]
        %v964 = vld [vmem:[%s381 + $0x8] sm:$0xff]
        %v965 = vld [vmem:[%s381 + $0x10] sm:$0xff]
        %v966 = vld [vmem:[%s381 + $0x18] sm:$0xff]
        %v967 = vld [vmem:[%s381 + $0x20] sm:$0xff]
        %v968 = vld [vmem:[%s381 + $0x28] sm:$0xff]
        %v969 = vld [vmem:[%s381 + $0x30] sm:$0xff]
        %v970 = vld [vmem:[%s381 + $0x38] sm:$0xff]
        %v971 = vld [vmem:[%s381 + $0x40] sm:$0xff]
        %v972 = vld [vmem:[%s381 + $0x48] sm:$0xff]
        %v973 = vld [vmem:[%s381 + $0x50] sm:$0xff]
        %v974 = vld [vmem:[%s381 + $0x58] sm:$0xff]
        %v975 = vld [vmem:[%s381 + $0x60] sm:$0xff]
        %v976 = vadd.f32 %v910, %v963
        %v977 = vadd.f32 %v913, %v964
        %v978 = vadd.f32 %v918, %v965
        %v979 = vadd.f32 %v921, %v966
        %v980 = vadd.f32 %v926, %v967
        %v981 = vadd.f32 %v929, %v968
        %v982 = vadd.f32 %v934, %v969
        %v983 = vadd.f32 %v937, %v970
        %v984 = vadd.f32 %v942, %v971
        %v985 = vadd.f32 %v945, %v972
        %v986 = vadd.f32 %v950, %v973
        %v987 = vadd.f32 %v953, %v974
        %v988 = vadd.f32 %v958, %v975
        %vm989 = vcmask 23552
        %v990 = vsel %vm989, %v976, -inf
        %991 = vmax.xlane.f32.xlu0 %v990
        %v992 = vpop.xlane.xlu0 %991
        %v993 = vsel %vm989, %v977, -inf
        %994 = vmax.xlane.f32.xlu0 %v993
        %v995 = vpop.xlane.xlu0 %994
        %v996 = vsel %vm989, %v978, -inf
        %997 = vmax.xlane.f32.xlu0 %v996
        %v998 = vpop.xlane.xlu0 %997
        %v999 = vsel %vm989, %v979, -inf
        %1000 = vmax.xlane.f32.xlu0 %v999
        %v1001 = vpop.xlane.xlu0 %1000
        %v1002 = vsel %vm989, %v980, -inf
        %1003 = vmax.xlane.f32.xlu0 %v1002
        %v1004 = vpop.xlane.xlu0 %1003
        %v1005 = vsel %vm989, %v981, -inf
        %1006 = vmax.xlane.f32.xlu0 %v1005
        %v1007 = vpop.xlane.xlu0 %1006
        %v1008 = vsel %vm989, %v982, -inf
        %1009 = vmax.xlane.f32.xlu0 %v1008
        %v1010 = vpop.xlane.xlu0 %1009
        %v1011 = vsel %vm989, %v983, -inf
        %1012 = vmax.xlane.f32.xlu0 %v1011
        %v1013 = vpop.xlane.xlu0 %1012
        %v1014 = vsel %vm989, %v984, -inf
        %1015 = vmax.xlane.f32.xlu0 %v1014
        %v1016 = vpop.xlane.xlu0 %1015
        %v1017 = vsel %vm989, %v985, -inf
        %1018 = vmax.xlane.f32.xlu0 %v1017
        %v1019 = vpop.xlane.xlu0 %1018
        %v1020 = vsel %vm989, %v986, -inf
        %1021 = vmax.xlane.f32.xlu0 %v1020
        %v1022 = vpop.xlane.xlu0 %1021
        %v1023 = vsel %vm989, %v987, -inf
        %1024 = vmax.xlane.f32.xlu0 %v1023
        %v1025 = vpop.xlane.xlu0 %1024
        %v1026 = vsel %vm989, %v988, -inf
        %1027 = vmax.xlane.f32.xlu0 %v1026
        %v1028 = vpop.xlane.xlu0 %1027
        %v1029 = vlaneseq
        %v1030 = vand.u32 %v1029, 127
        %vm1031 = vcmp.eq.f32.partialorder %v976, %v992
        %vm1032 = vcmp.eq.f32.partialorder %v977, %v995
        %vm1033 = vcmp.eq.f32.partialorder %v978, %v998
        %vm1034 = vcmp.eq.f32.partialorder %v979, %v1001
        %vm1035 = vcmp.eq.f32.partialorder %v980, %v1004
        %vm1036 = vcmp.eq.f32.partialorder %v981, %v1007
        %vm1037 = vcmp.eq.f32.partialorder %v982, %v1010
        %vm1038 = vcmp.eq.f32.partialorder %v983, %v1013
        %vm1039 = vcmp.eq.f32.partialorder %v984, %v1016
        %vm1040 = vcmp.eq.f32.partialorder %v985, %v1019
        %vm1041 = vcmp.eq.f32.partialorder %v986, %v1022
        %vm1042 = vcmp.eq.f32.partialorder %v987, %v1025
        %vm1043 = vcmp.eq.f32.partialorder %v988, %v1028
        %v1044 = vsel %vm1031, %v1030, 3
        %v1045 = vsel %vm1032, %v1030, 3
        %v1046 = vsel %vm1033, %v1030, 3
        %v1047 = vsel %vm1034, %v1030, 3
        %v1048 = vsel %vm1035, %v1030, 3
        %v1049 = vsel %vm1036, %v1030, 3
        %v1050 = vsel %vm1037, %v1030, 3
        %v1051 = vsel %vm1038, %v1030, 3
        %v1052 = vsel %vm1039, %v1030, 3
        %v1053 = vsel %vm1040, %v1030, 3
        %v1054 = vsel %vm1041, %v1030, 3
        %v1055 = vsel %vm1042, %v1030, 3
        %v1056 = vsel %vm1043, %v1030, 3
        %v1057 = vsel %vm989, %v1044, 2147483647
        %v1058 = vand.u32 %v1057, 65535
        %v1059 = vshra.s32 %v1057, 16
        %v1060 = vcvt.s32.f32 %v1058
        %v1061 = vcvt.s32.f32 %v1059
        %1062 = vmin.xlane.f32.xlu0 %v1061
        %v1063 = vpop.xlane.xlu0 %1062
        %vm1064 = vcmp.eq.f32.partialorder %v1061, %v1063
        %v1065 = vsel %vm1064, %v1060, inf
        %1066 = vmin.xlane.f32.xlu0 %v1065
        %v1067 = vpop.xlane.xlu0 %1066
        %v1068 = vcvt.f32.s32 %v1067
        %v1069 = vcvt.f32.s32 %v1063
        %v1070 = vshll.u32 %v1069, 16
        %v1071 = vadd.s32 %v1070, %v1068
        %v1072 = vsel %vm989, %v1045, 2147483647
        %v1073 = vand.u32 %v1072, 65535
        %v1074 = vshra.s32 %v1072, 16
        %v1075 = vcvt.s32.f32 %v1073
        %v1076 = vcvt.s32.f32 %v1074
        %1077 = vmin.xlane.f32.xlu0 %v1076
        %v1078 = vpop.xlane.xlu0 %1077
        %vm1079 = vcmp.eq.f32.partialorder %v1076, %v1078
        %v1080 = vsel %vm1079, %v1075, inf
        %1081 = vmin.xlane.f32.xlu0 %v1080
        %v1082 = vpop.xlane.xlu0 %1081
        %v1083 = vcvt.f32.s32 %v1082
        %v1084 = vcvt.f32.s32 %v1078
        %v1085 = vshll.u32 %v1084, 16
        %v1086 = vadd.s32 %v1085, %v1083
        %v1087 = vsel %vm989, %v1046, 2147483647
        %v1088 = vand.u32 %v1087, 65535
        %v1089 = vshra.s32 %v1087, 16
        %v1090 = vcvt.s32.f32 %v1088
        %v1091 = vcvt.s32.f32 %v1089
        %1092 = vmin.xlane.f32.xlu0 %v1091
        %v1093 = vpop.xlane.xlu0 %1092
        %vm1094 = vcmp.eq.f32.partialorder %v1091, %v1093
        %v1095 = vsel %vm1094, %v1090, inf
        %1096 = vmin.xlane.f32.xlu0 %v1095
        %v1097 = vpop.xlane.xlu0 %1096
        %v1098 = vcvt.f32.s32 %v1097
        %v1099 = vcvt.f32.s32 %v1093
        %v1100 = vshll.u32 %v1099, 16
        %v1101 = vadd.s32 %v1100, %v1098
        %v1102 = vsel %vm989, %v1047, 2147483647
        %v1103 = vand.u32 %v1102, 65535
        %v1104 = vshra.s32 %v1102, 16
        %v1105 = vcvt.s32.f32 %v1103
        %v1106 = vcvt.s32.f32 %v1104
        %1107 = vmin.xlane.f32.xlu0 %v1106
        %v1108 = vpop.xlane.xlu0 %1107
        %vm1109 = vcmp.eq.f32.partialorder %v1106, %v1108
        %v1110 = vsel %vm1109, %v1105, inf
        %1111 = vmin.xlane.f32.xlu0 %v1110
        %v1112 = vpop.xlane.xlu0 %1111
        %v1113 = vcvt.f32.s32 %v1112
        %v1114 = vcvt.f32.s32 %v1108
        %v1115 = vshll.u32 %v1114, 16
        %v1116 = vadd.s32 %v1115, %v1113
        %v1117 = vsel %vm989, %v1048, 2147483647
        %v1118 = vand.u32 %v1117, 65535
        %v1119 = vshra.s32 %v1117, 16
        %v1120 = vcvt.s32.f32 %v1118
        %v1121 = vcvt.s32.f32 %v1119
        %1122 = vmin.xlane.f32.xlu0 %v1121
        %v1123 = vpop.xlane.xlu0 %1122
        %vm1124 = vcmp.eq.f32.partialorder %v1121, %v1123
        %v1125 = vsel %vm1124, %v1120, inf
        %1126 = vmin.xlane.f32.xlu0 %v1125
        %v1127 = vpop.xlane.xlu0 %1126
        %v1128 = vcvt.f32.s32 %v1127
        %v1129 = vcvt.f32.s32 %v1123
        %v1130 = vshll.u32 %v1129, 16
        %v1131 = vadd.s32 %v1130, %v1128
        %v1132 = vsel %vm989, %v1049, 2147483647
        %v1133 = vand.u32 %v1132, 65535
        %v1134 = vshra.s32 %v1132, 16
        %v1135 = vcvt.s32.f32 %v1133
        %v1136 = vcvt.s32.f32 %v1134
        %1137 = vmin.xlane.f32.xlu0 %v1136
        %v1138 = vpop.xlane.xlu0 %1137
        %vm1139 = vcmp.eq.f32.partialorder %v1136, %v1138
        %v1140 = vsel %vm1139, %v1135, inf
        %1141 = vmin.xlane.f32.xlu0 %v1140
        %v1142 = vpop.xlane.xlu0 %1141
        %v1143 = vcvt.f32.s32 %v1142
        %v1144 = vcvt.f32.s32 %v1138
        %v1145 = vshll.u32 %v1144, 16
        %v1146 = vadd.s32 %v1145, %v1143
        %v1147 = vsel %vm989, %v1050, 2147483647
        %v1148 = vand.u32 %v1147, 65535
        %v1149 = vshra.s32 %v1147, 16
        %v1150 = vcvt.s32.f32 %v1148
        %v1151 = vcvt.s32.f32 %v1149
        %1152 = vmin.xlane.f32.xlu0 %v1151
        %v1153 = vpop.xlane.xlu0 %1152
        %vm1154 = vcmp.eq.f32.partialorder %v1151, %v1153
        %v1155 = vsel %vm1154, %v1150, inf
        %1156 = vmin.xlane.f32.xlu0 %v1155
        %v1157 = vpop.xlane.xlu0 %1156
        %v1158 = vcvt.f32.s32 %v1157
        %v1159 = vcvt.f32.s32 %v1153
        %v1160 = vshll.u32 %v1159, 16
        %v1161 = vadd.s32 %v1160, %v1158
        %v1162 = vsel %vm989, %v1051, 2147483647
        %v1163 = vand.u32 %v1162, 65535
        %v1164 = vshra.s32 %v1162, 16
        %v1165 = vcvt.s32.f32 %v1163
        %v1166 = vcvt.s32.f32 %v1164
        %1167 = vmin.xlane.f32.xlu0 %v1166
        %v1168 = vpop.xlane.xlu0 %1167
        %vm1169 = vcmp.eq.f32.partialorder %v1166, %v1168
        %v1170 = vsel %vm1169, %v1165, inf
        %1171 = vmin.xlane.f32.xlu0 %v1170
        %v1172 = vpop.xlane.xlu0 %1171
        %v1173 = vcvt.f32.s32 %v1172
        %v1174 = vcvt.f32.s32 %v1168
        %v1175 = vshll.u32 %v1174, 16
        %v1176 = vadd.s32 %v1175, %v1173
        %v1177 = vsel %vm989, %v1052, 2147483647
        %v1178 = vand.u32 %v1177, 65535
        %v1179 = vshra.s32 %v1177, 16
        %v1180 = vcvt.s32.f32 %v1178
        %v1181 = vcvt.s32.f32 %v1179
        %1182 = vmin.xlane.f32.xlu0 %v1181
        %v1183 = vpop.xlane.xlu0 %1182
        %vm1184 = vcmp.eq.f32.partialorder %v1181, %v1183
        %v1185 = vsel %vm1184, %v1180, inf
        %1186 = vmin.xlane.f32.xlu0 %v1185
        %v1187 = vpop.xlane.xlu0 %1186
        %v1188 = vcvt.f32.s32 %v1187
        %v1189 = vcvt.f32.s32 %v1183
        %v1190 = vshll.u32 %v1189, 16
        %v1191 = vadd.s32 %v1190, %v1188
        %v1192 = vsel %vm989, %v1053, 2147483647
        %v1193 = vand.u32 %v1192, 65535
        %v1194 = vshra.s32 %v1192, 16
        %v1195 = vcvt.s32.f32 %v1193
        %v1196 = vcvt.s32.f32 %v1194
        %1197 = vmin.xlane.f32.xlu0 %v1196
        %v1198 = vpop.xlane.xlu0 %1197
        %vm1199 = vcmp.eq.f32.partialorder %v1196, %v1198
        %v1200 = vsel %vm1199, %v1195, inf
        %1201 = vmin.xlane.f32.xlu0 %v1200
        %v1202 = vpop.xlane.xlu0 %1201
        %v1203 = vcvt.f32.s32 %v1202
        %v1204 = vcvt.f32.s32 %v1198
        %v1205 = vshll.u32 %v1204, 16
        %v1206 = vadd.s32 %v1205, %v1203
        %v1207 = vsel %vm989, %v1054, 2147483647
        %v1208 = vand.u32 %v1207, 65535
        %v1209 = vshra.s32 %v1207, 16
        %v1210 = vcvt.s32.f32 %v1208
        %v1211 = vcvt.s32.f32 %v1209
        %1212 = vmin.xlane.f32.xlu0 %v1211
        %v1213 = vpop.xlane.xlu0 %1212
        %vm1214 = vcmp.eq.f32.partialorder %v1211, %v1213
        %v1215 = vsel %vm1214, %v1210, inf
        %1216 = vmin.xlane.f32.xlu0 %v1215
        %v1217 = vpop.xlane.xlu0 %1216
        %v1218 = vcvt.f32.s32 %v1217
        %v1219 = vcvt.f32.s32 %v1213
        %v1220 = vshll.u32 %v1219, 16
        %v1221 = vadd.s32 %v1220, %v1218
        %v1222 = vsel %vm989, %v1055, 2147483647
        %v1223 = vand.u32 %v1222, 65535
        %v1224 = vshra.s32 %v1222, 16
        %v1225 = vcvt.s32.f32 %v1223
        %v1226 = vcvt.s32.f32 %v1224
        %1227 = vmin.xlane.f32.xlu0 %v1226
        %v1228 = vpop.xlane.xlu0 %1227
        %vm1229 = vcmp.eq.f32.partialorder %v1226, %v1228
        %v1230 = vsel %vm1229, %v1225, inf
        %1231 = vmin.xlane.f32.xlu0 %v1230
        %v1232 = vpop.xlane.xlu0 %1231
        %v1233 = vcvt.f32.s32 %v1232
        %v1234 = vcvt.f32.s32 %v1228
        %v1235 = vshll.u32 %v1234, 16
        %v1236 = vadd.s32 %v1235, %v1233
        %v1237 = vsel %vm989, %v1056, 2147483647
        %v1238 = vand.u32 %v1237, 65535
        %v1239 = vshra.s32 %v1237, 16
        %v1240 = vcvt.s32.f32 %v1238
        %v1241 = vcvt.s32.f32 %v1239
        %1242 = vmin.xlane.f32.xlu0 %v1241
        %v1243 = vpop.xlane.xlu0 %1242
        %vm1244 = vcmp.eq.f32.partialorder %v1241, %v1243
        %v1245 = vsel %vm1244, %v1240, inf
        %1246 = vmin.xlane.f32.xlu0 %v1245
        %v1247 = vpop.xlane.xlu0 %1246
        %v1248 = vcvt.f32.s32 %v1247
        %v1249 = vcvt.f32.s32 %v1243
        %v1250 = vshll.u32 %v1249, 16
        %v1251 = vadd.s32 %v1250, %v1248
        %vm1252 = vcmask 7168
        %1253 = vst.msk [vmem:[%s366] sm:$0xff] %vm1252, %v1071
        %1254 = vst.msk [vmem:[%s366 + $0x8] sm:$0xff] %vm1252, %v1086
        %1255 = vst.msk [vmem:[%s366 + $0x10] sm:$0xff] %vm1252, %v1101
        %1256 = vst.msk [vmem:[%s366 + $0x18] sm:$0xff] %vm1252, %v1116
        %1257 = vst.msk [vmem:[%s366 + $0x20] sm:$0xff] %vm1252, %v1131
        %1258 = vst.msk [vmem:[%s366 + $0x28] sm:$0xff] %vm1252, %v1146
        %1259 = vst.msk [vmem:[%s366 + $0x30] sm:$0xff] %vm1252, %v1161
        %1260 = vst.msk [vmem:[%s366 + $0x38] sm:$0xff] %vm1252, %v1176
        %1261 = vst.msk [vmem:[%s366 + $0x40] sm:$0xff] %vm1252, %v1191
        %1262 = vst.msk [vmem:[%s366 + $0x48] sm:$0xff] %vm1252, %v1206
        %1263 = vst.msk [vmem:[%s366 + $0x50] sm:$0xff] %vm1252, %v1221
        %1264 = vst.msk [vmem:[%s366 + $0x58] sm:$0xff] %vm1252, %v1236
        %1265 = vst.msk [vmem:[%s366 + $0x60] sm:$0xff] %vm1252, %v1251
        %s1266 = sand.u32 %s191, 1
        %s1267 = scalar_lea.sflag [#allocation4], %s1266
        %s1268 = sand.u32 %s191, 1
        %s1269 = smul.addr %s1268, 104
        %s1270 = scalar_lea.vmem [#allocation5], %s1269
        %s1271 = sand.u32 %s217, 1
        %s1272 = sand.u32 %s217, 1
        %s1273 = smul.addr %s1272, 104
        %s1274 = scalar_lea.vmem [#allocation6], %s1273
        // Predicated region
        $region53: #{tpu_custom_call.1} parent=47 // pred_check
          %p1275 = pneg %p201
        $region54: #{tpu_custom_call.1} parent=47 // pred_check_branch
          %1277 = sbr.rel (%p1275) target = $region56
        $region55: #{tpu_custom_call.1} parent=47 // pred_region
          %s1278 = smul.u32 13, %s26
          %s1279 = ssub.s32 25, %s1278
          %p1280 = scmp.lt.s32.totalorder %s1279, 13
          %s1281 = scalar_select %p1280, %s1279, 13
          %s1282 = smul.u32 128, %s1281
          %s1284 = ssub.s32 1664, %s1282
          %1285 = vsyncadd %s1267, %s1284
          %p1286 = scmp.ne.s32.totalorder 0, %s1282
          %s1287 = smul.addr %s1278, 128
          %s1288 = scalar_lea.hbm %s7, %s1287
          %s1289 = smul.u32 8, %s1281
          %s1290 = sshll.u32 %s1270, 4
          %s1291 = int_to_ptr.vmem [resolvable:$true] %s1290
          %s1292 = sshll.u32 %s1289, 4
          %1296 = dma.vmem_to_hbm [thread:$0]  (%p1286), %s1291, %s1292, %s1288, %s1267, 128, 128, 8
        $region56: #{tpu_custom_call.1} parent=47 // pred_fallthru
          _
        // Predicated region
        $region57: #{tpu_custom_call.1} parent=47 // pred_check
          %p1297 = pneg %p227
        $region58: #{tpu_custom_call.1} parent=47 // pred_check_branch
          %1299 = sbr.rel (%p1297) target = $region60
        $region59: #{tpu_custom_call.1} parent=47 // pred_region
          %s1300 = smul.u32 13, %s26
          %s1301 = ssub.s32 25, %s1300
          %p1302 = scmp.lt.s32.totalorder %s1301, 13
          %s1303 = scalar_select %p1302, %s1301, 13
          %s1304 = smul.u32 128, %s1303
          %p1305 = scmp.ne.s32.totalorder 0, %s1304
          %s1306 = smul.addr %s1300, 8
          %s1307 = scalar_lea.vmem %s8, %s1306
          // Predicated region
          $region61: #{tpu_custom_call.1} parent=59 // pred_check
            %p1308 = pneg %p1305
          $region62: #{tpu_custom_call.1} parent=59 // pred_check_branch
            %1310 = sbr.rel (%p1308) target = $region64
          $region63: #{tpu_custom_call.1} parent=59 // pred_region
            // Predicated region
            $region65: #{tpu_custom_call.1} parent=63 // pred_check
              _
            $region66: #{tpu_custom_call.1} parent=63 // pred_check_branch
              %1312 = sbr.rel (0) target = $region68
            $region67: #{tpu_custom_call.1} parent=63 // pred_region
              // Predicated region
              $region87: #{tpu_custom_call.1} parent=67 // pred_check
                _
              $region88: #{tpu_custom_call.1} parent=67 // pred_check_branch
                %1386 = sbr.rel (0) target = $region90
              $region89: #{tpu_custom_call.1} parent=67 // pred_region
                %s1387 = sdiv.u32.pop %s1303, 13
                %s1388 = srem.u32.pop %s1303, 13
                // While loop
                $region91: #{tpu_custom_call.1} parent=89 // loop_pre_header
                  _
                $region92: #{tpu_custom_call.1} parent=89 // loop_header
                  %s1390 = sphi 0, %s1392
                  %p1391 = scmp.ge.s32.totalorder %s1390, %s1387
                  %s1395 = sphi 0, %s1426
                  %s1396 = sphi %s1274, %s1429
                  %s1397 = sphi %s1307, %s1430
                $region93: #{tpu_custom_call.1} parent=89 // loop_header_branch
                  %1394 = sbr.rel (%p1391) target = $region97
                $region94: #{tpu_custom_call.1} parent=89 // loop_body
                  %v1398 = vld [vmem:[%s1396] sm:$0xff]
                  %1399 = vst [vmem:[%s1397] sm:$0xff] %v1398
                  %v1400 = vld [vmem:[%s1396 + $0x8] sm:$0xff]
                  %1401 = vst [vmem:[%s1397 + $0x8] sm:$0xff] %v1400
                  %v1402 = vld [vmem:[%s1396 + $0x10] sm:$0xff]
                  %1403 = vst [vmem:[%s1397 + $0x10] sm:$0xff] %v1402
                  %v1404 = vld [vmem:[%s1396 + $0x18] sm:$0xff]
                  %1405 = vst [vmem:[%s1397 + $0x18] sm:$0xff] %v1404
                  %v1406 = vld [vmem:[%s1396 + $0x20] sm:$0xff]
                  %1407 = vst [vmem:[%s1397 + $0x20] sm:$0xff] %v1406
                  %v1408 = vld [vmem:[%s1396 + $0x28] sm:$0xff]
                  %1409 = vst [vmem:[%s1397 + $0x28] sm:$0xff] %v1408
                  %v1410 = vld [vmem:[%s1396 + $0x30] sm:$0xff]
                  %1411 = vst [vmem:[%s1397 + $0x30] sm:$0xff] %v1410
                  %v1412 = vld [vmem:[%s1396 + $0x38] sm:$0xff]
                  %1413 = vst [vmem:[%s1397 + $0x38] sm:$0xff] %v1412
                  %v1414 = vld [vmem:[%s1396 + $0x40] sm:$0xff]
                  %1415 = vst [vmem:[%s1397 + $0x40] sm:$0xff] %v1414
                  %v1416 = vld [vmem:[%s1396 + $0x48] sm:$0xff]
                  %1417 = vst [vmem:[%s1397 + $0x48] sm:$0xff] %v1416
                  %v1418 = vld [vmem:[%s1396 + $0x50] sm:$0xff]
                  %1419 = vst [vmem:[%s1397 + $0x50] sm:$0xff] %v1418
                  %v1420 = vld [vmem:[%s1396 + $0x58] sm:$0xff]
                  %1421 = vst [vmem:[%s1397 + $0x58] sm:$0xff] %v1420
                  %v1422 = vld [vmem:[%s1396 + $0x60] sm:$0xff]
                  %1423 = vst [vmem:[%s1397 + $0x60] sm:$0xff] %v1422
                  %s1424 = sadd.s32 1, %s1395
                  %p1425 = scmp.ge.s32.totalorder %s1424, %s1387
                  %s1426 = scalar_select %p1425, 0, %s1424
                  %s1427 = smul.u32 %s1426, 104
                  %s1428 = smul.u32 %s1426, 104
                  %s1429 = scalar_lea.vmem %s1274, %s1427 [#allocation6]
                  %s1430 = scalar_lea.vmem %s1307, %s1428
                $region95: #{tpu_custom_call.1} parent=89 // loop_footer
                  %s1392 = sadd.s32 %s1390, 1
                $region96: #{tpu_custom_call.1} parent=89 // loop_footer_branch
                  %1389 = sbr.rel target = $region92
                $region97: #{tpu_custom_call.1} parent=89 // loop_exit
                  _
                %s1431 = sdiv.u32.pop %s1303, 13
                %s1432 = srem.u32.pop %s1303, 13
                %s1433 = smul.u32 %s1431, 13
                %s1434 = smul.u32 8, %s1433
                %s1435 = scalar_lea.vmem %s1274, %s1434 [#allocation6]
                %s1436 = smul.u32 8, %s1433
                %s1437 = scalar_lea.vmem %s1307, %s1436
                // While loop
                $region98: #{tpu_custom_call.1} parent=89 // loop_pre_header
                  _
                $region99: #{tpu_custom_call.1} parent=89 // loop_header
                  %s1439 = sphi 0, %s1441
                  %p1440 = scmp.ge.s32.totalorder %s1439, %s1432
                  %s1444 = sphi 0, %s1451
                  %s1445 = sphi %s1435, %s1454
                  %s1446 = sphi %s1437, %s1455
                $region100: #{tpu_custom_call.1} parent=89 // loop_header_branch
                  %1443 = sbr.rel (%p1440) target = $region104
                $region101: #{tpu_custom_call.1} parent=89 // loop_body
                  %v1447 = vld [vmem:[%s1445] sm:$0xff]
                  %1448 = vst [vmem:[%s1446] sm:$0xff] %v1447
                  %s1449 = sadd.s32 1, %s1444
                  %p1450 = scmp.ge.s32.totalorder %s1449, %s1432
                  %s1451 = scalar_select %p1450, 0, %s1449
                  %s1452 = smul.u32 %s1451, 8
                  %s1453 = smul.u32 %s1451, 8
                  %s1454 = scalar_lea.vmem %s1435, %s1452 [#allocation6]
                  %s1455 = scalar_lea.vmem %s1437, %s1453
                $region102: #{tpu_custom_call.1} parent=89 // loop_footer
                  %s1441 = sadd.s32 %s1439, 1
                $region103: #{tpu_custom_call.1} parent=89 // loop_footer_branch
                  %1438 = sbr.rel target = $region99
                $region104: #{tpu_custom_call.1} parent=89 // loop_exit
                  _
              $region90: #{tpu_custom_call.1} parent=67 // pred_fallthru
                _
              // Predicated region
              $region105: #{tpu_custom_call.1} parent=67 // pred_check
                _
              $region106: #{tpu_custom_call.1} parent=67 // pred_check_branch
                %1457 = sbr.rel target = $region108
              $region107: #{tpu_custom_call.1} parent=67 // pred_region
                _
              $region108: #{tpu_custom_call.1} parent=67 // pred_fallthru
                _
            $region68: #{tpu_custom_call.1} parent=63 // pred_fallthru
              _
            // Predicated region
            $region69: #{tpu_custom_call.1} parent=63 // pred_check
              _
            $region70: #{tpu_custom_call.1} parent=63 // pred_check_branch
              %1314 = sbr.rel target = $region72
            $region71: #{tpu_custom_call.1} parent=63 // pred_region
              %s1316 = sdiv.u32.pop %s1303, 13
              %s1317 = srem.u32.pop %s1303, 13
              // While loop
              $region73: #{tpu_custom_call.1} parent=71 // loop_pre_header
                _
              $region74: #{tpu_custom_call.1} parent=71 // loop_header
                %s1319 = sphi 0, %s1321
                %p1320 = scmp.ge.s32.totalorder %s1319, %s1316
                %s1324 = sphi 0, %s1355
                %s1325 = sphi %s1274, %s1358
                %s1326 = sphi %s1307, %s1359
              $region75: #{tpu_custom_call.1} parent=71 // loop_header_branch
                %1323 = sbr.rel (%p1320) target = $region79
              $region76: #{tpu_custom_call.1} parent=71 // loop_body
                %v1327 = vld [vmem:[%s1325] sm:$0xff]
                %1328 = vst [vmem:[%s1326] sm:$0xff] %v1327
                %v1329 = vld [vmem:[%s1325 + $0x8] sm:$0xff]
                %1330 = vst [vmem:[%s1326 + $0x8] sm:$0xff] %v1329
                %v1331 = vld [vmem:[%s1325 + $0x10] sm:$0xff]
                %1332 = vst [vmem:[%s1326 + $0x10] sm:$0xff] %v1331
                %v1333 = vld [vmem:[%s1325 + $0x18] sm:$0xff]
                %1334 = vst [vmem:[%s1326 + $0x18] sm:$0xff] %v1333
                %v1335 = vld [vmem:[%s1325 + $0x20] sm:$0xff]
                %1336 = vst [vmem:[%s1326 + $0x20] sm:$0xff] %v1335
                %v1337 = vld [vmem:[%s1325 + $0x28] sm:$0xff]
                %1338 = vst [vmem:[%s1326 + $0x28] sm:$0xff] %v1337
                %v1339 = vld [vmem:[%s1325 + $0x30] sm:$0xff]
                %1340 = vst [vmem:[%s1326 + $0x30] sm:$0xff] %v1339
                %v1341 = vld [vmem:[%s1325 + $0x38] sm:$0xff]
                %1342 = vst [vmem:[%s1326 + $0x38] sm:$0xff] %v1341
                %v1343 = vld [vmem:[%s1325 + $0x40] sm:$0xff]
                %1344 = vst [vmem:[%s1326 + $0x40] sm:$0xff] %v1343
                %v1345 = vld [vmem:[%s1325 + $0x48] sm:$0xff]
                %1346 = vst [vmem:[%s1326 + $0x48] sm:$0xff] %v1345
                %v1347 = vld [vmem:[%s1325 + $0x50] sm:$0xff]
                %1348 = vst [vmem:[%s1326 + $0x50] sm:$0xff] %v1347
                %v1349 = vld [vmem:[%s1325 + $0x58] sm:$0xff]
                %1350 = vst [vmem:[%s1326 + $0x58] sm:$0xff] %v1349
                %v1351 = vld [vmem:[%s1325 + $0x60] sm:$0xff]
                %1352 = vst [vmem:[%s1326 + $0x60] sm:$0xff] %v1351
                %s1353 = sadd.s32 1, %s1324
                %p1354 = scmp.ge.s32.totalorder %s1353, %s1316
                %s1355 = scalar_select %p1354, 0, %s1353
                %s1356 = smul.u32 %s1355, 104
                %s1357 = smul.u32 %s1355, 104
                %s1358 = scalar_lea.vmem %s1274, %s1356 [#allocation6]
                %s1359 = scalar_lea.vmem %s1307, %s1357
              $region77: #{tpu_custom_call.1} parent=71 // loop_footer
                %s1321 = sadd.s32 %s1319, 1
              $region78: #{tpu_custom_call.1} parent=71 // loop_footer_branch
                %1318 = sbr.rel target = $region74
              $region79: #{tpu_custom_call.1} parent=71 // loop_exit
                _
              %s1360 = sdiv.u32.pop %s1303, 13
              %s1361 = srem.u32.pop %s1303, 13
              %s1362 = smul.u32 %s1360, 13
              %s1363 = smul.u32 8, %s1362
              %s1364 = scalar_lea.vmem %s1274, %s1363 [#allocation6]
              %s1365 = smul.u32 8, %s1362
              %s1366 = scalar_lea.vmem %s1307, %s1365
              // While loop
              $region80: #{tpu_custom_call.1} parent=71 // loop_pre_header
                _
              $region81: #{tpu_custom_call.1} parent=71 // loop_header
                %s1368 = sphi 0, %s1370
                %p1369 = scmp.ge.s32.totalorder %s1368, %s1361
                %s1373 = sphi 0, %s1380
                %s1374 = sphi %s1364, %s1383
                %s1375 = sphi %s1366, %s1384
              $region82: #{tpu_custom_call.1} parent=71 // loop_header_branch
                %1372 = sbr.rel (%p1369) target = $region86
              $region83: #{tpu_custom_call.1} parent=71 // loop_body
                %v1376 = vld [vmem:[%s1374] sm:$0xff]
                %1377 = vst [vmem:[%s1375] sm:$0xff] %v1376
                %s1378 = sadd.s32 1, %s1373
                %p1379 = scmp.ge.s32.totalorder %s1378, %s1361
                %s1380 = scalar_select %p1379, 0, %s1378
                %s1381 = smul.u32 %s1380, 8
                %s1382 = smul.u32 %s1380, 8
                %s1383 = scalar_lea.vmem %s1364, %s1381 [#allocation6]
                %s1384 = scalar_lea.vmem %s1366, %s1382
              $region84: #{tpu_custom_call.1} parent=71 // loop_footer
                %s1370 = sadd.s32 %s1368, 1
              $region85: #{tpu_custom_call.1} parent=71 // loop_footer_branch
                %1367 = sbr.rel target = $region81
              $region86: #{tpu_custom_call.1} parent=71 // loop_exit
                _
            $region72: #{tpu_custom_call.1} parent=63 // pred_fallthru
              _
          $region64: #{tpu_custom_call.1} parent=59 // pred_fallthru
            _
          %1458 = vnop
        $region60: #{tpu_custom_call.1} parent=47 // pred_fallthru
          _
      $region48: #{tpu_custom_call.1} parent=5 // pred_fallthru
        _
      %p1459 = scmp.le.s32.totalorder 2, %s21
      // Predicated region
      $region109: #{tpu_custom_call.1} parent=5 // pred_check
        %p1460 = pneg %p1459
      $region110: #{tpu_custom_call.1} parent=5 // pred_check_branch
        %1462 = sbr.rel (%p1460) target = $region112
      $region111: #{tpu_custom_call.1} parent=5 // pred_region
        %s1463 = ssub.s32 %s21, 2
        // Predicated region
        $region113: #{tpu_custom_call.1} parent=111 // pred_check
          %p1464 = pneg %p207
        $region114: #{tpu_custom_call.1} parent=111 // pred_check_branch
          %1466 = sbr.rel (%p1464) target = $region116
        $region115: #{tpu_custom_call.1} parent=111 // pred_region
          %s1467 = sand.u32 %s192, 1
          %s1468 = scalar_lea.sflag [#allocation4], %s1467
          %s1469 = sand.u32 %s192, 1
          %s1470 = smul.addr %s1469, 104
          %s1471 = scalar_lea.vmem [#allocation5], %s1470
          %1472 = dma.done %s1468, 1664
        $region116: #{tpu_custom_call.1} parent=111 // pred_fallthru
          _
        // Predicated region
        $region117: #{tpu_custom_call.1} parent=111 // pred_check
          %p1473 = pneg %p233
        $region118: #{tpu_custom_call.1} parent=111 // pred_check_branch
          %1475 = sbr.rel (%p1473) target = $region120
        $region119: #{tpu_custom_call.1} parent=111 // pred_region
          %s1476 = sand.u32 %s218, 1
          %s1477 = sand.u32 %s218, 1
          %s1478 = smul.addr %s1477, 104
          %s1479 = scalar_lea.vmem [#allocation6], %s1478
        $region120: #{tpu_custom_call.1} parent=111 // pred_fallthru
          _
      $region112: #{tpu_custom_call.1} parent=5 // pred_fallthru
        _
    $region6: #{tpu_custom_call.1} parent=1 // loop_footer
      %s25 = sadd.s32 1, %s21
    $region7: #{tpu_custom_call.1} parent=1 // loop_footer_branch
      %20 = sbr.rel target = $region3
    $region8: #{tpu_custom_call.1} parent=1 // loop_exit
      _
    %1480 = vsyncpa [#allocation3], 1
    %s1481 = scalar_lea.sflag [#allocation3], 1
    %1482 = vsyncpa %s1481, 1
    %1483 = vsyncpa [#allocation4], 1
    %s1484 = scalar_lea.sflag [#allocation4], 1
    %1485 = vsyncpa %s1484, 1

</llo_original>
